<compile_context>
chip_gen: v7x
topology: tpu7x:2x2x1
jax: 0.10.0
libtpu: 0.0.40
codegen_flags: <defaults>
</compile_context>

<pallas_src>
import numpy as np
import jax
import jax.numpy as jnp
from jax import lax
from jax.experimental import pallas as pl
from jax.experimental.pallas import tpu as pltpu

TAU = 2.0      # spikingjelly MultiStepLIFNode default tau
V_TH = 1.0     # spiking threshold (default v_threshold)
V_RESET = 0.0  # hard reset value (default v_reset)
BN_EPS = 1e-5


def mlp_kernel(x_ref, w1_ref, b1_ref, w2_ref, b2_ref, o_ref):
    """One batch element: x_ref (T, C, N) -> o_ref (T, C, N) output spikes."""
    T, C, N = x_ref.shape
    H = w1_ref.shape[0]
    inv_tau = 1.0 / TAU

    w1 = w1_ref[...]                                   # (H, C) bf16, BN1 scale folded in
    w2 = w2_ref[...]                                   # (C, H) bf16, BN2 scale folded in
    # Hoist the lane-broadcast of the per-channel biases out of the t-loops.
    b1 = jnp.broadcast_to(b1_ref[...], (H, N))         # (H, N) f32
    b2 = jnp.broadcast_to(b2_ref[...], (C, N))         # (C, N) f32

    # ---- fc1: Conv1d(1x1) as matmul over channels + folded BN + multi-step LIF.
    # Layer-1 spikes for all T stay in registers (no VMEM round trip) and feed
    # the second matmul directly.
    v1 = jnp.zeros((H, N), jnp.float32)
    s1 = []
    for t in range(T):                                 # T is small & static
        xt = x_ref[t].astype(jnp.bfloat16)             # (C, N) bf16 MXU operand
        y = jnp.dot(w1, xt, preferred_element_type=jnp.float32) + b1
        v1 = v1 + (y - v1) * inv_tau                   # charge (decay_input, v_reset=0)
        fired = v1 >= V_TH                             # fire (heaviside)
        s1.append(jnp.where(fired, 1.0, 0.0).astype(jnp.bfloat16))
        v1 = jnp.where(fired, V_RESET, v1)             # hard reset

    # ---- fc2: Conv1d(1x1) + folded BN + multi-step LIF, write (T, C, N) spikes.
    v2 = jnp.zeros((C, N), jnp.float32)
    for t in range(T):
        y = jnp.dot(w2, s1[t], preferred_element_type=jnp.float32) + b2
        v2 = v2 + (y - v2) * inv_tau
        fired = v2 >= V_TH
        o_ref[t] = jnp.where(fired, 1.0, 0.0).astype(o_ref.dtype)
        v2 = jnp.where(fired, V_RESET, v2)


def mlp_pallas(x, params):
    """x: (T, B, C, N) exactly as the PyTorch module; returns spikes (T, B, C, N)."""
    T, B, C, N = x.shape
    H = params['w1'].shape[0]

    grid_spec = pltpu.PrefetchScalarGridSpec(
        num_scalar_prefetch=0,
        grid=(B,),
        in_specs=[
            pl.BlockSpec((T, pl.Squeezed(), C, N), lambda b: (0, b, 0, 0)),  # x
            pl.BlockSpec((H, C), lambda b: (0, 0)),                          # w1 (scale-folded)
            pl.BlockSpec((H, 1), lambda b: (0, 0)),                          # b1
            pl.BlockSpec((C, H), lambda b: (0, 0)),                          # w2 (scale-folded)
            pl.BlockSpec((C, 1), lambda b: (0, 0)),                          # b2
        ],
        out_specs=pl.BlockSpec((T, pl.Squeezed(), C, N), lambda b: (0, b, 0, 0)),
    )
    return pl.pallas_call(
        mlp_kernel,
        out_shape=jax.ShapeDtypeStruct((T, B, C, N), x.dtype),
        grid_spec=grid_spec,
        compiler_params=pltpu.CompilerParams(dimension_semantics=("parallel",)),
    )(x, params['w1'], params['b1'], params['w2'], params['b2'])


# --------------------------- pure-JAX (XLA) reference ---------------------------

def _lif_ref(y):
    """Multi-step LIF over leading time axis. y: (T, ...) -> spikes, same shape."""
    def step(v, y_t):
        v = v + (y_t - v) * (1.0 / TAU)
        fired = v >= V_TH
        return jnp.where(fired, V_RESET, v), jnp.where(fired, 1.0, 0.0)

    v0 = jnp.zeros(y.shape[1:], jnp.float32)
    _, s = lax.scan(step, v0, y)
    return s


def mlp_reference(x, params):
    # Mirrors the kernel arithmetic (bf16 MXU operands, f32 accumulation,
    # BN scale pre-folded into weights, bias add in f32).
    y1 = jnp.einsum('hc,tbcn->tbhn', params['w1'], x.astype(jnp.bfloat16),
                    preferred_element_type=jnp.float32)
    y1 = y1 + params['b1'][None, None, :, :]
    s1 = _lif_ref(y1)
    y2 = jnp.einsum('ch,tbhn->tbcn', params['w2'], s1.astype(jnp.bfloat16),
                    preferred_element_type=jnp.float32)
    y2 = y2 + params['b2'][None, None, :, :]
    return _lif_ref(y2)


# --------------------------------- parameters -----------------------------------

def init_params(key, C, H):
    ks = jax.random.split(key, 6)
    # PyTorch Conv1d weights (out, in, 1) -> matmul form, plus conv biases.
    w1_pt = jax.random.normal(ks[0], (H, C), jnp.float32) / np.sqrt(C)
    b1_pt = 0.1 * jax.random.normal(ks[1], (H,), jnp.float32)
    w2_pt = jax.random.normal(ks[2], (C, H), jnp.float32) / np.sqrt(H)
    b2_pt = 0.1 * jax.random.normal(ks[3], (C,), jnp.float32)

    def bn(k, n):
        kg, kb, km, kv = jax.random.split(k, 4)
        gamma = 1.0 + 0.1 * jax.random.normal(kg, (n,), jnp.float32)
        beta = 0.1 * jax.random.normal(kb, (n,), jnp.float32)
        mean = 0.1 * jax.random.normal(km, (n,), jnp.float32)
        var = 0.25 + 0.25 * jnp.abs(jax.random.normal(kv, (n,), jnp.float32))
        scale = gamma / jnp.sqrt(var + BN_EPS)
        bias = beta - mean * scale
        return scale, bias

    s1, t1 = bn(ks[4], H)
    s2, t2 = bn(ks[5], C)
    # Offline fold: BN scale into conv weights (before bf16 cast), conv bias into
    # BN bias.  Only the per-channel bias add remains in the kernel.
    return dict(
        w1=(w1_pt * s1[:, None]).astype(jnp.bfloat16),     # (H, C) bf16 MXU operand
        b1=(t1 + s1 * b1_pt)[:, None].astype(jnp.float32),  # (H, 1) f32
        w2=(w2_pt * s2[:, None]).astype(jnp.bfloat16),     # (C, H) bf16 MXU operand
        b2=(t2 + s2 * b2_pt)[:, None].astype(jnp.float32),  # (C, 1) f32
    )


if __name__ == "__main__":
    # Small shapes consistent with the module: x is (T, B, C, N) with
    # in_features = out_features = 32, hidden_features = 128, seq N = 64, T = 4.
    T, B, C, N = 4, 2, 32, 64
    H = 128

    key = jax.random.PRNGKey(0)
    kx, kp = jax.random.split(key)
    x = 3.0 * jax.random.normal(kx, (T, B, C, N), jnp.float32)
    params = init_params(kp, C, H)

    out = mlp_pallas(x, params)
    jax.block_until_ready(out)

    ref = mlp_reference(x, params)
    np.testing.assert_allclose(np.asarray(out), np.asarray(ref), rtol=0, atol=1e-5)
    print("KERNEL_OK")
</pallas_src>

<mosaic_0001>
module attributes {stable_mosaic.version = 11 : i64} {
  func.func @mlp_kernel(%arg0: i32, %arg1: memref<4x1x32x64xf32, #tpu.memory_space<vmem>>, %arg2: memref<128x32xbf16, #tpu.memory_space<vmem>>, %arg3: memref<128x1xf32, #tpu.memory_space<vmem>>, %arg4: memref<32x128xbf16, #tpu.memory_space<vmem>>, %arg5: memref<32x1xf32, #tpu.memory_space<vmem>>, %arg6: memref<4x1x32x64xf32, #tpu.memory_space<vmem>>) attributes {dimension_semantics = [#tpu.dimension_semantics<parallel>], iteration_bounds = array<i64: 2>, scalar_prefetch = 0 : i64, scratch_operands = 0 : i64, tpu.core_type = #tpu.core_type<tc>, window_params = [{transform_indices = @transform_0, window_bounds = array<i64: 4, 1, 32, 64>}, {pipeline_mode = #tpu.pipeline_mode<synchronous>, transform_indices = @transform_1, window_bounds = array<i64: 128, 32>}, {pipeline_mode = #tpu.pipeline_mode<synchronous>, transform_indices = @transform_2, window_bounds = array<i64: 128, 1>}, {pipeline_mode = #tpu.pipeline_mode<synchronous>, transform_indices = @transform_3, window_bounds = array<i64: 32, 128>}, {pipeline_mode = #tpu.pipeline_mode<synchronous>, transform_indices = @transform_4, window_bounds = array<i64: 32, 1>}, {transform_indices = @transform_5, window_bounds = array<i64: 4, 1, 32, 64>}]} {
    %c0 = arith.constant 0 : index
    %c0_0 = arith.constant 0 : index
    %0 = vector.load %arg2[%c0, %c0_0] : memref<128x32xbf16, #tpu.memory_space<vmem>>, vector<128x32xbf16>
    %c0_1 = arith.constant 0 : index
    %c0_2 = arith.constant 0 : index
    %1 = vector.load %arg4[%c0_1, %c0_2] : memref<32x128xbf16, #tpu.memory_space<vmem>>, vector<32x128xbf16>
    %c0_3 = arith.constant 0 : index
    %c0_4 = arith.constant 0 : index
    %2 = vector.load %arg3[%c0_3, %c0_4] : memref<128x1xf32, #tpu.memory_space<vmem>>, vector<128x1xf32>
    %3 = vector.shape_cast %2 : vector<128x1xf32> to vector<128x1xf32>
    %4 = vector.broadcast %3 : vector<128x1xf32> to vector<128x64xf32>
    %c0_5 = arith.constant 0 : index
    %c0_6 = arith.constant 0 : index
    %5 = vector.load %arg5[%c0_5, %c0_6] : memref<32x1xf32, #tpu.memory_space<vmem>>, vector<32x1xf32>
    %6 = vector.shape_cast %5 : vector<32x1xf32> to vector<32x1xf32>
    %7 = vector.broadcast %6 : vector<32x1xf32> to vector<32x64xf32>
    %cst = arith.constant 0.000000e+00 : f32
    %8 = vector.broadcast %cst : f32 to vector<128x64xf32>
    %c0_7 = arith.constant 0 : index
    %c0_8 = arith.constant 0 : index
    %c0_9 = arith.constant 0 : index
    %c0_10 = arith.constant 0 : index
    %9 = vector.load %arg1[%c0_7, %c0_8, %c0_9, %c0_10] : memref<4x1x32x64xf32, #tpu.memory_space<vmem>>, vector<1x1x32x64xf32>
    %10 = vector.shape_cast %9 : vector<1x1x32x64xf32> to vector<32x64xf32>
    %11 = arith.truncf %10 : vector<32x64xf32> to vector<32x64xbf16>
    %cst_11 = arith.constant dense<0.000000e+00> : vector<128x64xf32>
    %12 = tpu.matmul %0, %11, %cst_11 {dimension_numbers = #tpu.dot_dimension_numbers<[1], [0], [0], [1], [0, 0, 1, 1], [], []>} : vector<128x32xbf16>, vector<32x64xbf16>, vector<128x64xf32> -> vector<128x64xf32>
    %13 = arith.addf %12, %4 : vector<128x64xf32>
    %14 = arith.subf %13, %8 : vector<128x64xf32>
    %cst_12 = arith.constant 5.000000e-01 : f32
    %15 = vector.broadcast %cst_12 : f32 to vector<128x64xf32>
    %16 = arith.mulf %14, %15 : vector<128x64xf32>
    %17 = arith.addf %8, %16 : vector<128x64xf32>
    %cst_13 = arith.constant 1.000000e+00 : f32
    %18 = vector.broadcast %cst_13 : f32 to vector<128x64xf32>
    %19 = arith.cmpf oge, %17, %18 : vector<128x64xf32>
    %cst_14 = arith.constant 1.000000e+00 : f32
    %cst_15 = arith.constant 0.000000e+00 : f32
    %20 = vector.broadcast %cst_14 : f32 to vector<128x64xf32>
    %21 = vector.broadcast %cst_15 : f32 to vector<128x64xf32>
    %22 = arith.select %19, %20, %21 : vector<128x64xi1>, vector<128x64xf32>
    %23 = arith.truncf %22 : vector<128x64xf32> to vector<128x64xbf16>
    %cst_16 = arith.constant 0.000000e+00 : f32
    %24 = vector.broadcast %cst_16 : f32 to vector<128x64xf32>
    %25 = arith.select %19, %24, %17 : vector<128x64xi1>, vector<128x64xf32>
    %c1 = arith.constant 1 : index
    %c0_17 = arith.constant 0 : index
    %c0_18 = arith.constant 0 : index
    %c0_19 = arith.constant 0 : index
    %26 = vector.load %arg1[%c1, %c0_17, %c0_18, %c0_19] : memref<4x1x32x64xf32, #tpu.memory_space<vmem>>, vector<1x1x32x64xf32>
    %27 = vector.shape_cast %26 : vector<1x1x32x64xf32> to vector<32x64xf32>
    %28 = arith.truncf %27 : vector<32x64xf32> to vector<32x64xbf16>
    %cst_20 = arith.constant dense<0.000000e+00> : vector<128x64xf32>
    %29 = tpu.matmul %0, %28, %cst_20 {dimension_numbers = #tpu.dot_dimension_numbers<[1], [0], [0], [1], [0, 0, 1, 1], [], []>} : vector<128x32xbf16>, vector<32x64xbf16>, vector<128x64xf32> -> vector<128x64xf32>
    %30 = arith.addf %29, %4 : vector<128x64xf32>
    %31 = arith.subf %30, %25 : vector<128x64xf32>
    %cst_21 = arith.constant 5.000000e-01 : f32
    %32 = vector.broadcast %cst_21 : f32 to vector<128x64xf32>
    %33 = arith.mulf %31, %32 : vector<128x64xf32>
    %34 = arith.addf %25, %33 : vector<128x64xf32>
    %cst_22 = arith.constant 1.000000e+00 : f32
    %35 = vector.broadcast %cst_22 : f32 to vector<128x64xf32>
    %36 = arith.cmpf oge, %34, %35 : vector<128x64xf32>
    %cst_23 = arith.constant 1.000000e+00 : f32
    %cst_24 = arith.constant 0.000000e+00 : f32
    %37 = vector.broadcast %cst_23 : f32 to vector<128x64xf32>
    %38 = vector.broadcast %cst_24 : f32 to vector<128x64xf32>
    %39 = arith.select %36, %37, %38 : vector<128x64xi1>, vector<128x64xf32>
    %40 = arith.truncf %39 : vector<128x64xf32> to vector<128x64xbf16>
    %cst_25 = arith.constant 0.000000e+00 : f32
    %41 = vector.broadcast %cst_25 : f32 to vector<128x64xf32>
    %42 = arith.select %36, %41, %34 : vector<128x64xi1>, vector<128x64xf32>
    %c2 = arith.constant 2 : index
    %c0_26 = arith.constant 0 : index
    %c0_27 = arith.constant 0 : index
    %c0_28 = arith.constant 0 : index
    %43 = vector.load %arg1[%c2, %c0_26, %c0_27, %c0_28] : memref<4x1x32x64xf32, #tpu.memory_space<vmem>>, vector<1x1x32x64xf32>
    %44 = vector.shape_cast %43 : vector<1x1x32x64xf32> to vector<32x64xf32>
    %45 = arith.truncf %44 : vector<32x64xf32> to vector<32x64xbf16>
    %cst_29 = arith.constant dense<0.000000e+00> : vector<128x64xf32>
    %46 = tpu.matmul %0, %45, %cst_29 {dimension_numbers = #tpu.dot_dimension_numbers<[1], [0], [0], [1], [0, 0, 1, 1], [], []>} : vector<128x32xbf16>, vector<32x64xbf16>, vector<128x64xf32> -> vector<128x64xf32>
    %47 = arith.addf %46, %4 : vector<128x64xf32>
    %48 = arith.subf %47, %42 : vector<128x64xf32>
    %cst_30 = arith.constant 5.000000e-01 : f32
    %49 = vector.broadcast %cst_30 : f32 to vector<128x64xf32>
    %50 = arith.mulf %48, %49 : vector<128x64xf32>
    %51 = arith.addf %42, %50 : vector<128x64xf32>
    %cst_31 = arith.constant 1.000000e+00 : f32
    %52 = vector.broadcast %cst_31 : f32 to vector<128x64xf32>
    %53 = arith.cmpf oge, %51, %52 : vector<128x64xf32>
    %cst_32 = arith.constant 1.000000e+00 : f32
    %cst_33 = arith.constant 0.000000e+00 : f32
    %54 = vector.broadcast %cst_32 : f32 to vector<128x64xf32>
    %55 = vector.broadcast %cst_33 : f32 to vector<128x64xf32>
    %56 = arith.select %53, %54, %55 : vector<128x64xi1>, vector<128x64xf32>
    %57 = arith.truncf %56 : vector<128x64xf32> to vector<128x64xbf16>
    %cst_34 = arith.constant 0.000000e+00 : f32
    %58 = vector.broadcast %cst_34 : f32 to vector<128x64xf32>
    %59 = arith.select %53, %58, %51 : vector<128x64xi1>, vector<128x64xf32>
    %c3 = arith.constant 3 : index
    %c0_35 = arith.constant 0 : index
    %c0_36 = arith.constant 0 : index
    %c0_37 = arith.constant 0 : index
    %60 = vector.load %arg1[%c3, %c0_35, %c0_36, %c0_37] : memref<4x1x32x64xf32, #tpu.memory_space<vmem>>, vector<1x1x32x64xf32>
    %61 = vector.shape_cast %60 : vector<1x1x32x64xf32> to vector<32x64xf32>
    %62 = arith.truncf %61 : vector<32x64xf32> to vector<32x64xbf16>
    %cst_38 = arith.constant dense<0.000000e+00> : vector<128x64xf32>
    %63 = tpu.matmul %0, %62, %cst_38 {dimension_numbers = #tpu.dot_dimension_numbers<[1], [0], [0], [1], [0, 0, 1, 1], [], []>} : vector<128x32xbf16>, vector<32x64xbf16>, vector<128x64xf32> -> vector<128x64xf32>
    %64 = arith.addf %63, %4 : vector<128x64xf32>
    %65 = arith.subf %64, %59 : vector<128x64xf32>
    %cst_39 = arith.constant 5.000000e-01 : f32
    %66 = vector.broadcast %cst_39 : f32 to vector<128x64xf32>
    %67 = arith.mulf %65, %66 : vector<128x64xf32>
    %68 = arith.addf %59, %67 : vector<128x64xf32>
    %cst_40 = arith.constant 1.000000e+00 : f32
    %69 = vector.broadcast %cst_40 : f32 to vector<128x64xf32>
    %70 = arith.cmpf oge, %68, %69 : vector<128x64xf32>
    %cst_41 = arith.constant 1.000000e+00 : f32
    %cst_42 = arith.constant 0.000000e+00 : f32
    %71 = vector.broadcast %cst_41 : f32 to vector<128x64xf32>
    %72 = vector.broadcast %cst_42 : f32 to vector<128x64xf32>
    %73 = arith.select %70, %71, %72 : vector<128x64xi1>, vector<128x64xf32>
    %74 = arith.truncf %73 : vector<128x64xf32> to vector<128x64xbf16>
    %cst_43 = arith.constant 0.000000e+00 : f32
    %75 = vector.broadcast %cst_43 : f32 to vector<32x64xf32>
    %cst_44 = arith.constant dense<0.000000e+00> : vector<32x64xf32>
    %76 = tpu.matmul %1, %23, %cst_44 {dimension_numbers = #tpu.dot_dimension_numbers<[1], [0], [0], [1], [0, 0, 1, 1], [], []>} : vector<32x128xbf16>, vector<128x64xbf16>, vector<32x64xf32> -> vector<32x64xf32>
    %77 = arith.addf %76, %7 : vector<32x64xf32>
    %78 = arith.subf %77, %75 : vector<32x64xf32>
    %cst_45 = arith.constant 5.000000e-01 : f32
    %79 = vector.broadcast %cst_45 : f32 to vector<32x64xf32>
    %80 = arith.mulf %78, %79 : vector<32x64xf32>
    %81 = arith.addf %75, %80 : vector<32x64xf32>
    %cst_46 = arith.constant 1.000000e+00 : f32
    %82 = vector.broadcast %cst_46 : f32 to vector<32x64xf32>
    %83 = arith.cmpf oge, %81, %82 : vector<32x64xf32>
    %cst_47 = arith.constant 1.000000e+00 : f32
    %cst_48 = arith.constant 0.000000e+00 : f32
    %84 = vector.broadcast %cst_47 : f32 to vector<32x64xf32>
    %85 = vector.broadcast %cst_48 : f32 to vector<32x64xf32>
    %86 = arith.select %83, %84, %85 : vector<32x64xi1>, vector<32x64xf32>
    %c0_49 = arith.constant 0 : index
    %c0_50 = arith.constant 0 : index
    %c0_51 = arith.constant 0 : index
    %c0_52 = arith.constant 0 : index
    %87 = vector.load %arg6[%c0_49, %c0_50, %c0_51, %c0_52] : memref<4x1x32x64xf32, #tpu.memory_space<vmem>>, vector<1x1x32x64xf32>
    %88 = vector.shape_cast %87 : vector<1x1x32x64xf32> to vector<32x64xf32>
    %89 = vector.shape_cast %86 : vector<32x64xf32> to vector<1x1x32x64xf32>
    tpu.vector_store %arg6[%c0_49, %c0_50, %c0_51, %c0_52], %89 {strides = array<i32>} : memref<4x1x32x64xf32, #tpu.memory_space<vmem>>, vector<1x1x32x64xf32>,
    %cst_53 = arith.constant 0.000000e+00 : f32
    %90 = vector.broadcast %cst_53 : f32 to vector<32x64xf32>
    %91 = arith.select %83, %90, %81 : vector<32x64xi1>, vector<32x64xf32>
    %cst_54 = arith.constant dense<0.000000e+00> : vector<32x64xf32>
    %92 = tpu.matmul %1, %40, %cst_54 {dimension_numbers = #tpu.dot_dimension_numbers<[1], [0], [0], [1], [0, 0, 1, 1], [], []>} : vector<32x128xbf16>, vector<128x64xbf16>, vector<32x64xf32> -> vector<32x64xf32>
    %93 = arith.addf %92, %7 : vector<32x64xf32>
    %94 = arith.subf %93, %91 : vector<32x64xf32>
    %cst_55 = arith.constant 5.000000e-01 : f32
    %95 = vector.broadcast %cst_55 : f32 to vector<32x64xf32>
    %96 = arith.mulf %94, %95 : vector<32x64xf32>
    %97 = arith.addf %91, %96 : vector<32x64xf32>
    %cst_56 = arith.constant 1.000000e+00 : f32
    %98 = vector.broadcast %cst_56 : f32 to vector<32x64xf32>
    %99 = arith.cmpf oge, %97, %98 : vector<32x64xf32>
    %cst_57 = arith.constant 1.000000e+00 : f32
    %cst_58 = arith.constant 0.000000e+00 : f32
    %100 = vector.broadcast %cst_57 : f32 to vector<32x64xf32>
    %101 = vector.broadcast %cst_58 : f32 to vector<32x64xf32>
    %102 = arith.select %99, %100, %101 : vector<32x64xi1>, vector<32x64xf32>
    %c1_59 = arith.constant 1 : index
    %c0_60 = arith.constant 0 : index
    %c0_61 = arith.constant 0 : index
    %c0_62 = arith.constant 0 : index
    %103 = vector.load %arg6[%c1_59, %c0_60, %c0_61, %c0_62] : memref<4x1x32x64xf32, #tpu.memory_space<vmem>>, vector<1x1x32x64xf32>
    %104 = vector.shape_cast %103 : vector<1x1x32x64xf32> to vector<32x64xf32>
    %105 = vector.shape_cast %102 : vector<32x64xf32> to vector<1x1x32x64xf32>
    tpu.vector_store %arg6[%c1_59, %c0_60, %c0_61, %c0_62], %105 {strides = array<i32>} : memref<4x1x32x64xf32, #tpu.memory_space<vmem>>, vector<1x1x32x64xf32>,
    %cst_63 = arith.constant 0.000000e+00 : f32
    %106 = vector.broadcast %cst_63 : f32 to vector<32x64xf32>
    %107 = arith.select %99, %106, %97 : vector<32x64xi1>, vector<32x64xf32>
    %cst_64 = arith.constant dense<0.000000e+00> : vector<32x64xf32>
    %108 = tpu.matmul %1, %57, %cst_64 {dimension_numbers = #tpu.dot_dimension_numbers<[1], [0], [0], [1], [0, 0, 1, 1], [], []>} : vector<32x128xbf16>, vector<128x64xbf16>, vector<32x64xf32> -> vector<32x64xf32>
    %109 = arith.addf %108, %7 : vector<32x64xf32>
    %110 = arith.subf %109, %107 : vector<32x64xf32>
    %cst_65 = arith.constant 5.000000e-01 : f32
    %111 = vector.broadcast %cst_65 : f32 to vector<32x64xf32>
    %112 = arith.mulf %110, %111 : vector<32x64xf32>
    %113 = arith.addf %107, %112 : vector<32x64xf32>
    %cst_66 = arith.constant 1.000000e+00 : f32
    %114 = vector.broadcast %cst_66 : f32 to vector<32x64xf32>
    %115 = arith.cmpf oge, %113, %114 : vector<32x64xf32>
    %cst_67 = arith.constant 1.000000e+00 : f32
    %cst_68 = arith.constant 0.000000e+00 : f32
    %116 = vector.broadcast %cst_67 : f32 to vector<32x64xf32>
    %117 = vector.broadcast %cst_68 : f32 to vector<32x64xf32>
    %118 = arith.select %115, %116, %117 : vector<32x64xi1>, vector<32x64xf32>
    %c2_69 = arith.constant 2 : index
    %c0_70 = arith.constant 0 : index
    %c0_71 = arith.constant 0 : index
    %c0_72 = arith.constant 0 : index
    %119 = vector.load %arg6[%c2_69, %c0_70, %c0_71, %c0_72] : memref<4x1x32x64xf32, #tpu.memory_space<vmem>>, vector<1x1x32x64xf32>
    %120 = vector.shape_cast %119 : vector<1x1x32x64xf32> to vector<32x64xf32>
    %121 = vector.shape_cast %118 : vector<32x64xf32> to vector<1x1x32x64xf32>
    tpu.vector_store %arg6[%c2_69, %c0_70, %c0_71, %c0_72], %121 {strides = array<i32>} : memref<4x1x32x64xf32, #tpu.memory_space<vmem>>, vector<1x1x32x64xf32>,
    %cst_73 = arith.constant 0.000000e+00 : f32
    %122 = vector.broadcast %cst_73 : f32 to vector<32x64xf32>
    %123 = arith.select %115, %122, %113 : vector<32x64xi1>, vector<32x64xf32>
    %cst_74 = arith.constant dense<0.000000e+00> : vector<32x64xf32>
    %124 = tpu.matmul %1, %74, %cst_74 {dimension_numbers = #tpu.dot_dimension_numbers<[1], [0], [0], [1], [0, 0, 1, 1], [], []>} : vector<32x128xbf16>, vector<128x64xbf16>, vector<32x64xf32> -> vector<32x64xf32>
    %125 = arith.addf %124, %7 : vector<32x64xf32>
    %126 = arith.subf %125, %123 : vector<32x64xf32>
    %cst_75 = arith.constant 5.000000e-01 : f32
    %127 = vector.broadcast %cst_75 : f32 to vector<32x64xf32>
    %128 = arith.mulf %126, %127 : vector<32x64xf32>
    %129 = arith.addf %123, %128 : vector<32x64xf32>
    %cst_76 = arith.constant 1.000000e+00 : f32
    %130 = vector.broadcast %cst_76 : f32 to vector<32x64xf32>
    %131 = arith.cmpf oge, %129, %130 : vector<32x64xf32>
    %cst_77 = arith.constant 1.000000e+00 : f32
    %cst_78 = arith.constant 0.000000e+00 : f32
    %132 = vector.broadcast %cst_77 : f32 to vector<32x64xf32>
    %133 = vector.broadcast %cst_78 : f32 to vector<32x64xf32>
    %134 = arith.select %131, %132, %133 : vector<32x64xi1>, vector<32x64xf32>
    %c3_79 = arith.constant 3 : index
    %c0_80 = arith.constant 0 : index
    %c0_81 = arith.constant 0 : index
    %c0_82 = arith.constant 0 : index
    %135 = vector.load %arg6[%c3_79, %c0_80, %c0_81, %c0_82] : memref<4x1x32x64xf32, #tpu.memory_space<vmem>>, vector<1x1x32x64xf32>
    %136 = vector.shape_cast %135 : vector<1x1x32x64xf32> to vector<32x64xf32>
    %137 = vector.shape_cast %134 : vector<32x64xf32> to vector<1x1x32x64xf32>
    tpu.vector_store %arg6[%c3_79, %c0_80, %c0_81, %c0_82], %137 {strides = array<i32>} : memref<4x1x32x64xf32, #tpu.memory_space<vmem>>, vector<1x1x32x64xf32>,
    return
  }
  func.func @transform_0(%arg0: i32) -> (i32, i32, i32, i32) {
    %c0_i32 = arith.constant 0 : i32
    %c0_i32_0 = arith.constant 0 : i32
    %c0_i32_1 = arith.constant 0 : i32
    %c0_i32_2 = arith.constant 0 : i32
    return %c0_i32, %arg0, %c0_i32_0, %c0_i32_1 : i32, i32, i32, i32
  }
  func.func @transform_1(%arg0: i32) -> (i32, i32) {
    %c0_i32 = arith.constant 0 : i32
    %c0_i32_0 = arith.constant 0 : i32
    %c0_i32_1 = arith.constant 0 : i32
    return %c0_i32, %c0_i32_0 : i32, i32
  }
  func.func @transform_2(%arg0: i32) -> (i32, i32) {
    %c0_i32 = arith.constant 0 : i32
    %c0_i32_0 = arith.constant 0 : i32
    %c0_i32_1 = arith.constant 0 : i32
    return %c0_i32, %c0_i32_0 : i32, i32
  }
  func.func @transform_3(%arg0: i32) -> (i32, i32) {
    %c0_i32 = arith.constant 0 : i32
    %c0_i32_0 = arith.constant 0 : i32
    %c0_i32_1 = arith.constant 0 : i32
    return %c0_i32, %c0_i32_0 : i32, i32
  }
  func.func @transform_4(%arg0: i32) -> (i32, i32) {
    %c0_i32 = arith.constant 0 : i32
    %c0_i32_0 = arith.constant 0 : i32
    %c0_i32_1 = arith.constant 0 : i32
    return %c0_i32, %c0_i32_0 : i32, i32
  }
  func.func @transform_5(%arg0: i32) -> (i32, i32, i32, i32) {
    %c0_i32 = arith.constant 0 : i32
    %c0_i32_0 = arith.constant 0 : i32
    %c0_i32_1 = arith.constant 0 : i32
    %c0_i32_2 = arith.constant 0 : i32
    return %c0_i32, %arg0, %c0_i32_0, %c0_i32_1 : i32, i32, i32, i32
  }
}

</mosaic_0001>

<llo_original>
// kernel: tpu_custom_call.1
$region0: #{tpu_custom_call.1}
  #allocation0 [shape = 'u32[]', space=smem, size = 0x4, offset = 0x4, fixed_abs, tag = 'smem constant byte address 0x4 - core index']
  #allocation1 [shape = 'u32[144,128]{1,0:T(1,128)}', space=vmem, size = 0x12000, scoped, tag = 'internal scratch']
  #allocation6 [shape = 's32[]', space=sflag, size = 0x4, offset = 0, fixed_abs, tag = 'sflag constant byte address 0x0 - dummy sync flag']
  #allocation8 [shape = 's32[]', space=sflag, size = 0x4, offset = 0, fixed_abs, tag = 'sflag constant byte address 0x0 - dummy sync flag']
  %s0 = inlined_call_operand.hbm [shape: f32[4,2,32,64], index: 0, kind: input, shape index: {}]
  %s1 = inlined_call_operand.vmem [shape: bf16[128,32], index: 1, kind: input, shape index: {}]
  %s2 = inlined_call_operand.vmem [shape: f32[128,1], index: 2, kind: input, shape index: {}]
  %s3 = inlined_call_operand.vmem [shape: bf16[32,128], index: 3, kind: input, shape index: {}]
  %s4 = inlined_call_operand.vmem [shape: f32[32,1], index: 4, kind: input, shape index: {}]
  %s5 = inlined_call_operand.hbm [shape: f32[4,2,32,64], index: 5, kind: output, shape index: {}]
  %s6 = sld [smem:[#allocation0]]
  $region57: #{tpu_custom_call.1} parent=0
    _
  %s8 = ssub.s32 1, %s6
  %s9 = scalar_select 0, %s8, %s6
  $region1: #{tpu_custom_call.1} parent=0
    #allocation2 [shape = 'u8[131072]{0}', space=vmem, size = 0x20000, scoped, tag = 'input window, operand 0']
    #allocation3 [shape = 's32[2]{0}', space=sflag, size = 0x8, scoped, tag = 'scoped memory for tpu_custom_call.1']
    #allocation4 [shape = 's32[2]{0}', space=sflag, size = 0x8, scoped, tag = 'scoped memory for tpu_custom_call.1']
    #allocation5 [shape = 'u8[131072]{0}', space=vmem, size = 0x20000, scoped, tag = 'output window, operand 0']
    %10 = vsyncpa [#allocation3], 0
    %s11 = scalar_lea.sflag [#allocation3], 1
    %12 = vsyncpa %s11, 0
    %13 = vsyncpa [#allocation4], 0
    %s14 = scalar_lea.sflag [#allocation4], 1
    %15 = vsyncpa %s14, 0
    loop: start=0, step=1, limit=4
    $region2: #{tpu_custom_call.1} parent=1 // loop_pre_header
      _
    $region3: #{tpu_custom_call.1} parent=1 // loop_header
      %s17 = sphi 0, %s21
      %p18 = scmp.ge.s32.totalorder %s17, 4
      %s27 = sphi 0, %s29
      %s30 = sphi 0, %s27
      %s31 = sphi 0, %s30
      %s47 = sphi 0, %s31
      %s51 = sphi 0, %s51
      %s53 = sphi 0, %s51
      %s54 = sphi 0, %s53
      %s68 = sphi 0, %s54
      %s72 = sphi 0, %s72
      %s74 = sphi 0, %s72
      %s75 = sphi 0, %s74
      %s89 = sphi 0, %s75
      %s93 = sphi 0, %s93
      %s95 = sphi 0, %s93
      %s96 = sphi 0, %s95
      %s110 = sphi 0, %s96
      %s114 = sphi 0, %s114
      %s116 = sphi 0, %s114
      %s117 = sphi 0, %s116
      %s131 = sphi 0, %s117
      %s137 = sphi 0, %s139
      %s140 = sphi 0, %s137
      %s141 = sphi 0, %s140
      %s157 = sphi 0, %s141
    $region4: #{tpu_custom_call.1} parent=1 // loop_header_branch
      %20 = sbr.rel (%p18) target = $region8
    $region5: #{tpu_custom_call.1} parent=1 // loop_body
      %s22 = ssub.s32 %s17, 1
      %s23 = ssub.s32 %s17, 2
      %s24 = sadd.s32 %s17, 1
      %s25 = ssub.s32 %s17, %s24
      %p26 = scmp.eq.s32.totalorder %s25, 0
      %s28 = sadd.s32 %s27, 1
      %s29 = scalar_select %p26, %s27, %s28
      %p32 = pneg %p26
      %p33 = scmp.eq.s32.totalorder %s17, 1
      %p34 = por %p32, %p33
      %p35 = scmp.ne.s32.totalorder %s27, %s30
      %p36 = scmp.eq.s32.totalorder %s17, 0
      %p37 = por %p35, %p36
      %p38 = scmp.ne.s32.totalorder %s27, %s30
      %p39 = scmp.eq.s32.totalorder %s22, 1
      %p40 = por %p38, %p39
      %p41 = scmp.ne.s32.totalorder %s30, %s31
      %p42 = scmp.eq.s32.totalorder %s22, 0
      %p43 = por %p41, %p42
      %p44 = scmp.ne.s32.totalorder %s30, %s31
      %p45 = scmp.eq.s32.totalorder %s23, 1
      %p46 = por %p44, %p45
      %p48 = scmp.ne.s32.totalorder %s31, %s47
      %p49 = scmp.eq.s32.totalorder %s23, 0
      %p50 = por %p48, %p49
      %s52 = sadd.s32 %s51, 1
      %p55 = scmp.eq.s32.totalorder %s17, 1
      %p56 = scmp.ne.s32.totalorder %s51, %s53
      %p57 = scmp.eq.s32.totalorder %s17, 0
      %p58 = por %p56, %p57
      %p59 = scmp.ne.s32.totalorder %s51, %s53
      %p60 = scmp.eq.s32.totalorder %s22, 1
      %p61 = por %p59, %p60
      %p62 = scmp.ne.s32.totalorder %s53, %s54
      %p63 = scmp.eq.s32.totalorder %s22, 0
      %p64 = por %p62, %p63
      %p65 = scmp.ne.s32.totalorder %s53, %s54
      %p66 = scmp.eq.s32.totalorder %s23, 1
      %p67 = por %p65, %p66
      %p69 = scmp.ne.s32.totalorder %s54, %s68
      %p70 = scmp.eq.s32.totalorder %s23, 0
      %p71 = por %p69, %p70
      %s73 = sadd.s32 %s72, 1
      %p76 = scmp.eq.s32.totalorder %s17, 1
      %p77 = scmp.ne.s32.totalorder %s72, %s74
      %p78 = scmp.eq.s32.totalorder %s17, 0
      %p79 = por %p77, %p78
      %p80 = scmp.ne.s32.totalorder %s72, %s74
      %p81 = scmp.eq.s32.totalorder %s22, 1
      %p82 = por %p80, %p81
      %p83 = scmp.ne.s32.totalorder %s74, %s75
      %p84 = scmp.eq.s32.totalorder %s22, 0
      %p85 = por %p83, %p84
      %p86 = scmp.ne.s32.totalorder %s74, %s75
      %p87 = scmp.eq.s32.totalorder %s23, 1
      %p88 = por %p86, %p87
      %p90 = scmp.ne.s32.totalorder %s75, %s89
      %p91 = scmp.eq.s32.totalorder %s23, 0
      %p92 = por %p90, %p91
      %s94 = sadd.s32 %s93, 1
      %p97 = scmp.eq.s32.totalorder %s17, 1
      %p98 = scmp.ne.s32.totalorder %s93, %s95
      %p99 = scmp.eq.s32.totalorder %s17, 0
      %p100 = por %p98, %p99
      %p101 = scmp.ne.s32.totalorder %s93, %s95
      %p102 = scmp.eq.s32.totalorder %s22, 1
      %p103 = por %p101, %p102
      %p104 = scmp.ne.s32.totalorder %s95, %s96
      %p105 = scmp.eq.s32.totalorder %s22, 0
      %p106 = por %p104, %p105
      %p107 = scmp.ne.s32.totalorder %s95, %s96
      %p108 = scmp.eq.s32.totalorder %s23, 1
      %p109 = por %p107, %p108
      %p111 = scmp.ne.s32.totalorder %s96, %s110
      %p112 = scmp.eq.s32.totalorder %s23, 0
      %p113 = por %p111, %p112
      %s115 = sadd.s32 %s114, 1
      %p118 = scmp.eq.s32.totalorder %s17, 1
      %p119 = scmp.ne.s32.totalorder %s114, %s116
      %p120 = scmp.eq.s32.totalorder %s17, 0
      %p121 = por %p119, %p120
      %p122 = scmp.ne.s32.totalorder %s114, %s116
      %p123 = scmp.eq.s32.totalorder %s22, 1
      %p124 = por %p122, %p123
      %p125 = scmp.ne.s32.totalorder %s116, %s117
      %p126 = scmp.eq.s32.totalorder %s22, 0
      %p127 = por %p125, %p126
      %p128 = scmp.ne.s32.totalorder %s116, %s117
      %p129 = scmp.eq.s32.totalorder %s23, 1
      %p130 = por %p128, %p129
      %p132 = scmp.ne.s32.totalorder %s117, %s131
      %p133 = scmp.eq.s32.totalorder %s23, 0
      %p134 = por %p132, %p133
      %s135 = ssub.s32 %s17, %s24
      %p136 = scmp.eq.s32.totalorder %s135, 0
      %s138 = sadd.s32 %s137, 1
      %s139 = scalar_select %p136, %s137, %s138
      %p142 = pneg %p136
      %p143 = scmp.eq.s32.totalorder %s17, 1
      %p144 = por %p142, %p143
      %p145 = scmp.ne.s32.totalorder %s137, %s140
      %p146 = scmp.eq.s32.totalorder %s17, 0
      %p147 = por %p145, %p146
      %p148 = scmp.ne.s32.totalorder %s137, %s140
      %p149 = scmp.eq.s32.totalorder %s22, 1
      %p150 = por %p148, %p149
      %p151 = scmp.ne.s32.totalorder %s140, %s141
      %p152 = scmp.eq.s32.totalorder %s22, 0
      %p153 = por %p151, %p152
      %p154 = scmp.ne.s32.totalorder %s140, %s141
      %p155 = scmp.eq.s32.totalorder %s23, 1
      %p156 = por %p154, %p155
      %p158 = scmp.ne.s32.totalorder %s141, %s157
      %p159 = scmp.eq.s32.totalorder %s23, 0
      %p160 = por %p158, %p159
      %p161 = scmp.le.s32.totalorder 1, %s17
      %p162 = scmp.lt.s32.totalorder %s17, 3
      %p163 = pnand %p161, %p162
      %p164 = pneg %p163
      // Predicated region
      $region9: #{tpu_custom_call.1} parent=5 // pred_check
        _
      $region10: #{tpu_custom_call.1} parent=5 // pred_check_branch
        %166 = sbr.rel (%p163) target = $region12
      $region11: #{tpu_custom_call.1} parent=5 // pred_region
        %s167 = ssub.s32 %s17, 1
        // Predicated region
        $region13: #{tpu_custom_call.1} parent=11 // pred_check
          %p168 = pneg %p64
        $region14: #{tpu_custom_call.1} parent=11 // pred_check_branch
          %170 = sbr.rel (%p168) target = $region16
        $region15: #{tpu_custom_call.1} parent=11 // pred_region
          _
        $region16: #{tpu_custom_call.1} parent=11 // pred_fallthru
          _
        // Predicated region
        $region17: #{tpu_custom_call.1} parent=11 // pred_check
          %p171 = pneg %p85
        $region18: #{tpu_custom_call.1} parent=11 // pred_check_branch
          %173 = sbr.rel (%p171) target = $region20
        $region19: #{tpu_custom_call.1} parent=11 // pred_region
          _
        $region20: #{tpu_custom_call.1} parent=11 // pred_fallthru
          _
        // Predicated region
        $region21: #{tpu_custom_call.1} parent=11 // pred_check
          %p174 = pneg %p106
        $region22: #{tpu_custom_call.1} parent=11 // pred_check_branch
          %176 = sbr.rel (%p174) target = $region24
        $region23: #{tpu_custom_call.1} parent=11 // pred_region
          _
        $region24: #{tpu_custom_call.1} parent=11 // pred_fallthru
          _
        // Predicated region
        $region25: #{tpu_custom_call.1} parent=11 // pred_check
          %p177 = pneg %p127
        $region26: #{tpu_custom_call.1} parent=11 // pred_check_branch
          %179 = sbr.rel (%p177) target = $region28
        $region27: #{tpu_custom_call.1} parent=11 // pred_region
          _
        $region28: #{tpu_custom_call.1} parent=11 // pred_fallthru
          _
      $region12: #{tpu_custom_call.1} parent=5 // pred_fallthru
        _
      %p180 = scmp.lt.s32.totalorder %s17, 2
      // Predicated region
      $region29: #{tpu_custom_call.1} parent=5 // pred_check
        %p181 = pneg %p180
      $region30: #{tpu_custom_call.1} parent=5 // pred_check_branch
        %183 = sbr.rel (%p181) target = $region32
      $region31: #{tpu_custom_call.1} parent=5 // pred_region
        // Predicated region
        $region33: #{tpu_custom_call.1} parent=31 // pred_check
          %p184 = pneg %p37
        $region34: #{tpu_custom_call.1} parent=31 // pred_check_branch
          %186 = sbr.rel (%p184) target = $region36
        $region35: #{tpu_custom_call.1} parent=31 // pred_region
          #allocation7 [shape = 'u32[6]{0}', space=smem, size = 0x18, scoped, tag = 'DMA stride descriptor']
          %s187 = sand.u32 %s27, 1
          %s188 = scalar_lea.sflag [#allocation3], %s187
          %s189 = sand.u32 %s27, 1
          %s190 = smul.addr %s189, 128
          %s191 = scalar_lea.vmem [#allocation2], %s190
          %s193 = ssub.s32 2048, 2048
          %194 = vsyncadd %s188, %s193
          %s195 = smul.addr %s17, 4
          %s196 = smul.addr %s195, 128
          %s197 = scalar_lea.hbm %s0, %s196
          %s199 = sshll.u32 1, 14
          %s200 = sxor.u32 4294967295, %s199
          %s202 = sld [smem:[#allocation0]]
          %s203 = sadd.s32 2, %s202
          %s205 = sshll.u32 7, 26
          %s206 = sxor.u32 4294967295, %s205
          %s207 = sand.u32 0, %s206
          %s208 = sshll.u32 %s203, 26
          %s209 = sor.u32 %s207, %s208
          %s210 = sshll.u32 %s191, 4
          %s211 = int_to_ptr.vmem [resolvable:$true] %s210
          %217 = sst [smem:[#allocation7]] 1024
          %s218 = scalar_lea.smem [#allocation7], 1
          %219 = sst [smem:[%s218]] 512
          %s220 = scalar_lea.smem [#allocation7], 2
          %221 = sst [smem:[%s220]] 4
          %s222 = scalar_lea.smem [#allocation7], 3
          %223 = sst [smem:[%s222]] 128
          %s224 = scalar_lea.smem [#allocation7], 4
          %225 = sst [smem:[%s224]] 128
          %s226 = scalar_lea.smem [#allocation7], 5
          %227 = sst [smem:[%s226]] 8
          %229 = dma.general %s197, 2048, %s211, %s188, [#allocation6], [#allocation7], %s209, 0
        $region36: #{tpu_custom_call.1} parent=31 // pred_fallthru
          _
      $region32: #{tpu_custom_call.1} parent=5 // pred_fallthru
        _
      %p230 = scmp.le.s32.totalorder 1, %s17
      %p231 = scmp.lt.s32.totalorder %s17, 3
      %p232 = pnand %p230, %p231
      %p233 = pneg %p232
      // Predicated region
      $region37: #{tpu_custom_call.1} parent=5 // pred_check
        _
      $region38: #{tpu_custom_call.1} parent=5 // pred_check_branch
        %235 = sbr.rel (%p232) target = $region40
      $region39: #{tpu_custom_call.1} parent=5 // pred_region
        %s236 = ssub.s32 %s17, 1
        %s237 = sand.u32 %s30, 1
        %s238 = scalar_lea.sflag [#allocation3], %s237
        %s239 = sand.u32 %s30, 1
        %s240 = smul.addr %s239, 128
        %s241 = scalar_lea.vmem [#allocation2], %s240
        // Predicated region
        $region41: #{tpu_custom_call.1} parent=39 // pred_check
          %p242 = pneg %p43
        $region42: #{tpu_custom_call.1} parent=39 // pred_check_branch
          %244 = sbr.rel (%p242) target = $region44
        $region43: #{tpu_custom_call.1} parent=39 // pred_region
          %245 = dma.done %s238, 2048
        $region44: #{tpu_custom_call.1} parent=39 // pred_fallthru
          _
        %s246 = sand.u32 %s30, 1
        %s247 = scalar_lea.sflag [#allocation3], %s246
        %s248 = sand.u32 %s30, 1
        %s249 = smul.addr %s248, 128
        %s250 = scalar_lea.vmem [#allocation2], %s249
        %p251 = pneg %p43
        %p252 = pneg %p40
        %p253 = pneg %p64
        %p254 = pneg %p61
        %p255 = pneg %p85
        %p256 = pneg %p82
        %p257 = pneg %p106
        %p258 = pneg %p103
        %p259 = pneg %p127
        %p260 = pneg %p124
        %p261 = pneg %p153
        %p262 = pneg %p150
        %s263 = sand.u32 %s140, 1
        %s264 = scalar_lea.sflag [#allocation4], %s263
        %s265 = sand.u32 %s140, 1
        %s266 = smul.addr %s265, 128
        %s267 = scalar_lea.vmem [#allocation5], %s266
        %v269 = vld [vmem:[%s1] sm:$0xf]
        %v270 = vld [vmem:[%s1 + $0x4] sm:$0xf]
        %v271 = vld [vmem:[%s1 + $0x8] sm:$0xf]
        %v272 = vld [vmem:[%s1 + $0xc] sm:$0xf]
        %v273 = vld [vmem:[%s1 + $0x10] sm:$0xf]
        %v274 = vld [vmem:[%s1 + $0x14] sm:$0xf]
        %v275 = vld [vmem:[%s1 + $0x18] sm:$0xf]
        %v276 = vld [vmem:[%s1 + $0x1c] sm:$0xf]
        %v277 = vld [vmem:[%s1 + $0x20] sm:$0xf]
        %v278 = vld [vmem:[%s1 + $0x24] sm:$0xf]
        %v279 = vld [vmem:[%s1 + $0x28] sm:$0xf]
        %v280 = vld [vmem:[%s1 + $0x2c] sm:$0xf]
        %v281 = vld [vmem:[%s1 + $0x30] sm:$0xf]
        %v282 = vld [vmem:[%s1 + $0x34] sm:$0xf]
        %v283 = vld [vmem:[%s1 + $0x38] sm:$0xf]
        %v284 = vld [vmem:[%s1 + $0x3c] sm:$0xf]
        %v285 = vld [vmem:[%s3] sm:$0xf]
        %v286 = vld [vmem:[%s3 + $0x4] sm:$0xf]
        %v287 = vld [vmem:[%s3 + $0x8] sm:$0xf]
        %v288 = vld [vmem:[%s3 + $0xc] sm:$0xf]
        %v289 = vld [vmem:[%s2] sm:$0xff]
        %v290 = vld [vmem:[%s2 + $0x8] sm:$0xff]
        %v291 = vld [vmem:[%s2 + $0x10] sm:$0xff]
        %v292 = vld [vmem:[%s2 + $0x18] sm:$0xff]
        %v293 = vld [vmem:[%s2 + $0x20] sm:$0xff]
        %v294 = vld [vmem:[%s2 + $0x28] sm:$0xff]
        %v295 = vld [vmem:[%s2 + $0x30] sm:$0xff]
        %v296 = vld [vmem:[%s2 + $0x38] sm:$0xff]
        %v297 = vld [vmem:[%s2 + $0x40] sm:$0xff]
        %v298 = vld [vmem:[%s2 + $0x48] sm:$0xff]
        %v299 = vld [vmem:[%s2 + $0x50] sm:$0xff]
        %v300 = vld [vmem:[%s2 + $0x58] sm:$0xff]
        %v301 = vld [vmem:[%s2 + $0x60] sm:$0xff]
        %v302 = vld [vmem:[%s2 + $0x68] sm:$0xff]
        %v303 = vld [vmem:[%s2 + $0x70] sm:$0xff]
        %v304 = vld [vmem:[%s2 + $0x78] sm:$0xff]
        %306 = vset.pattern.permute.xlu0 0
        %307 = vperm.xlu0 %306, %v289
        %v308 = vpop.permute.xlu0 %307
        %311 = vset.pattern.permute.xlu0 0
        %312 = vperm.xlu0 %311, %v290
        %v313 = vpop.permute.xlu0 %312
        %316 = vset.pattern.permute.xlu0 0
        %317 = vperm.xlu0 %316, %v291
        %v318 = vpop.permute.xlu0 %317
        %321 = vset.pattern.permute.xlu0 0
        %322 = vperm.xlu0 %321, %v292
        %v323 = vpop.permute.xlu0 %322
        %326 = vset.pattern.permute.xlu0 0
        %327 = vperm.xlu0 %326, %v293
        %v328 = vpop.permute.xlu0 %327
        %331 = vset.pattern.permute.xlu0 0
        %332 = vperm.xlu0 %331, %v294
        %v333 = vpop.permute.xlu0 %332
        %336 = vset.pattern.permute.xlu0 0
        %337 = vperm.xlu0 %336, %v295
        %v338 = vpop.permute.xlu0 %337
        %341 = vset.pattern.permute.xlu0 0
        %342 = vperm.xlu0 %341, %v296
        %v343 = vpop.permute.xlu0 %342
        %346 = vset.pattern.permute.xlu0 0
        %347 = vperm.xlu0 %346, %v297
        %v348 = vpop.permute.xlu0 %347
        %351 = vset.pattern.permute.xlu0 0
        %352 = vperm.xlu0 %351, %v298
        %v353 = vpop.permute.xlu0 %352
        %356 = vset.pattern.permute.xlu0 0
        %357 = vperm.xlu0 %356, %v299
        %v358 = vpop.permute.xlu0 %357
        %361 = vset.pattern.permute.xlu0 0
        %362 = vperm.xlu0 %361, %v300
        %v363 = vpop.permute.xlu0 %362
        %366 = vset.pattern.permute.xlu0 0
        %367 = vperm.xlu0 %366, %v301
        %v368 = vpop.permute.xlu0 %367
        %371 = vset.pattern.permute.xlu0 0
        %372 = vperm.xlu0 %371, %v302
        %v373 = vpop.permute.xlu0 %372
        %376 = vset.pattern.permute.xlu0 0
        %377 = vperm.xlu0 %376, %v303
        %v378 = vpop.permute.xlu0 %377
        %381 = vset.pattern.permute.xlu0 0
        %382 = vperm.xlu0 %381, %v304
        %v383 = vpop.permute.xlu0 %382
        %v385 = vld [vmem:[%s4] sm:$0xff]
        %v386 = vld [vmem:[%s4 + $0x8] sm:$0xff]
        %v387 = vld [vmem:[%s4 + $0x10] sm:$0xff]
        %v388 = vld [vmem:[%s4 + $0x18] sm:$0xff]
        %390 = vset.pattern.permute.xlu0 0
        %391 = vperm.xlu0 %390, %v385
        %v392 = vpop.permute.xlu0 %391
        %395 = vset.pattern.permute.xlu0 0
        %396 = vperm.xlu0 %395, %v386
        %v397 = vpop.permute.xlu0 %396
        %400 = vset.pattern.permute.xlu0 0
        %401 = vperm.xlu0 %400, %v387
        %v402 = vpop.permute.xlu0 %401
        %405 = vset.pattern.permute.xlu0 0
        %406 = vperm.xlu0 %405, %v388
        %v407 = vpop.permute.xlu0 %406
        %v409 = vld [vmem:[%s241] sm:$0xff]
        %v410 = vld [vmem:[%s241 + $0x8] sm:$0xff]
        %v411 = vld [vmem:[%s241 + $0x10] sm:$0xff]
        %v412 = vld [vmem:[%s241 + $0x18] sm:$0xff]
        %v413 = vpack.c.bf16 %v410, %v409
        %v414 = vpack.c.bf16 %v412, %v411
        %v431 = vunpack.c.l.b16 %v269
        %v432 = vunpack.c.l.b16 %v270
        %v433 = vunpack.c.l.b16 %v271
        %v434 = vunpack.c.l.b16 %v272
        %v435 = vunpack.c.l.b16 %v273
        %v436 = vunpack.c.l.b16 %v274
        %v437 = vunpack.c.l.b16 %v275
        %v438 = vunpack.c.l.b16 %v276
        %v439 = vunpack.c.l.b16 %v277
        %v440 = vunpack.c.l.b16 %v278
        %v441 = vunpack.c.l.b16 %v279
        %v442 = vunpack.c.l.b16 %v280
        %v443 = vunpack.c.l.b16 %v281
        %v444 = vunpack.c.l.b16 %v282
        %v445 = vunpack.c.l.b16 %v283
        %v446 = vunpack.c.l.b16 %v284
        %v447 = vpack.c.b16 %v432, %v431
        %v448 = vpack.c.b16 %v434, %v433
        %v449 = vpack.c.b16 %v436, %v435
        %v450 = vpack.c.b16 %v438, %v437
        %v451 = vpack.c.b16 %v440, %v439
        %v452 = vpack.c.b16 %v442, %v441
        %v453 = vpack.c.b16 %v444, %v443
        %v454 = vpack.c.b16 %v446, %v445
        %vm455 = vcmask 261120
        %v457 = vsel %vm455, %v447, 0
        %v460 = vsel %vm455, %v448, 0
        %v463 = vsel %vm455, %v449, 0
        %v466 = vsel %vm455, %v450, 0
        %v469 = vsel %vm455, %v451, 0
        %v472 = vsel %vm455, %v452, 0
        %v475 = vsel %vm455, %v453, 0
        %v478 = vsel %vm455, %v454, 0
        %480 = vmatprep.subr.bf16.mxu0 0
        %481 = vmatpush1.bf16.msra.mxu0 %v413
        %482 = vmatprep.subr.bf16.mxu0 0
        %483 = vmatpush1.bf16.msra.mxu0 %v414
        %484 = vmatprep.subr.bf16.mxu0 0
        %485 = vmatpush1.bf16.msra.mxu0 0
        %486 = vmatprep.subr.bf16.mxu0 0
        %487 = vmatpush1.bf16.msra.mxu0 0
        %488 = vmatprep.subr.bf16.mxu0 0
        %489 = vmatpush1.bf16.msra.mxu0 0
        %490 = vmatprep.subr.bf16.mxu0 0
        %491 = vmatpush1.bf16.msra.mxu0 0
        %492 = vmatprep.subr.bf16.mxu0 0
        %493 = vmatpush1.bf16.msra.mxu0 0
        %494 = vmatprep.subr.bf16.mxu0 0
        %495 = vmatpush1.bf16.msra.mxu0 0
        %496 = vmatprep.subr.bf16.mxu0 0
        %497 = vmatpush1.bf16.msra.mxu0 0
        %498 = vmatprep.subr.bf16.mxu0 0
        %499 = vmatpush1.bf16.msra.mxu0 0
        %500 = vmatprep.subr.bf16.mxu0 0
        %501 = vmatpush1.bf16.msra.mxu0 0
        %502 = vmatprep.subr.bf16.mxu0 0
        %503 = vmatpush1.bf16.msra.mxu0 0
        %504 = vmatprep.subr.bf16.mxu0 0
        %505 = vmatpush1.bf16.msra.mxu0 0
        %506 = vmatprep.subr.bf16.mxu0 0
        %507 = vmatpush1.bf16.msra.mxu0 0
        %508 = vmatprep.subr.bf16.mxu0 0
        %509 = vmatpush1.bf16.msra.mxu0 0
        %510 = vmatprep.subr.bf16.mxu0 0
        %511 = vmatpush1.bf16.msra.mxu0 0
        %512 = vmatprep.mubr.bf16.mxu0 0
        %513 = vmatmul.mubr.bf16.gmra.mrb[0].mxu0 %v457
        %v514 = vpop.f32.mrb[0].mxu0
        %v515 = vadd.f32 %v308, %v514
        %v516 = vpop.f32.mrb[0].mxu0
        %v517 = vpop.f32.mrb[0].mxu0
        %v518 = vadd.f32 %v313, %v517
        %v519 = vpop.f32.mrb[0].mxu0
        %520 = vmatprep.mubr.bf16.mxu0 0
        %521 = vmatmul.mubr.bf16.gmra.mrb[0].mxu0 %v460
        %v522 = vpop.f32.mrb[0].mxu0
        %v523 = vadd.f32 %v318, %v522
        %v524 = vpop.f32.mrb[0].mxu0
        %v525 = vpop.f32.mrb[0].mxu0
        %v526 = vadd.f32 %v323, %v525
        %v527 = vpop.f32.mrb[0].mxu0
        %528 = vmatprep.mubr.bf16.mxu0 0
        %529 = vmatmul.mubr.bf16.gmra.mrb[0].mxu0 %v463
        %v530 = vpop.f32.mrb[0].mxu0
        %v531 = vadd.f32 %v328, %v530
        %v532 = vpop.f32.mrb[0].mxu0
        %v533 = vpop.f32.mrb[0].mxu0
        %v534 = vadd.f32 %v333, %v533
        %v535 = vpop.f32.mrb[0].mxu0
        %536 = vmatprep.mubr.bf16.mxu0 0
        %537 = vmatmul.mubr.bf16.gmra.mrb[0].mxu0 %v466
        %v538 = vpop.f32.mrb[0].mxu0
        %v539 = vadd.f32 %v338, %v538
        %v540 = vpop.f32.mrb[0].mxu0
        %v541 = vpop.f32.mrb[0].mxu0
        %v542 = vadd.f32 %v343, %v541
        %v543 = vpop.f32.mrb[0].mxu0
        %544 = vmatprep.mubr.bf16.mxu0 0
        %545 = vmatmul.mubr.bf16.gmra.mrb[0].mxu0 %v469
        %v546 = vpop.f32.mrb[0].mxu0
        %v547 = vadd.f32 %v348, %v546
        %v548 = vpop.f32.mrb[0].mxu0
        %v549 = vpop.f32.mrb[0].mxu0
        %v550 = vadd.f32 %v353, %v549
        %v551 = vpop.f32.mrb[0].mxu0
        %552 = vmatprep.mubr.bf16.mxu0 0
        %553 = vmatmul.mubr.bf16.gmra.mrb[0].mxu0 %v472
        %v554 = vpop.f32.mrb[0].mxu0
        %v555 = vadd.f32 %v358, %v554
        %v556 = vpop.f32.mrb[0].mxu0
        %v557 = vpop.f32.mrb[0].mxu0
        %v558 = vadd.f32 %v363, %v557
        %v559 = vpop.f32.mrb[0].mxu0
        %560 = vmatprep.mubr.bf16.mxu0 0
        %561 = vmatmul.mubr.bf16.gmra.mrb[0].mxu0 %v475
        %v562 = vpop.f32.mrb[0].mxu0
        %v563 = vadd.f32 %v368, %v562
        %v564 = vpop.f32.mrb[0].mxu0
        %v565 = vpop.f32.mrb[0].mxu0
        %v566 = vadd.f32 %v373, %v565
        %v567 = vpop.f32.mrb[0].mxu0
        %568 = vmatprep.mubr.bf16.mxu0 0
        %569 = vmatmul.mubr.bf16.gmra.mrb[0].mxu0 %v478
        %v570 = vpop.f32.mrb[0].mxu0
        %v571 = vadd.f32 %v378, %v570
        %v572 = vpop.f32.mrb[0].mxu0
        %v573 = vpop.f32.mrb[0].mxu0
        %v574 = vadd.f32 %v383, %v573
        %v575 = vpop.f32.mrb[0].mxu0
        %576 = vdwg.mxu0
        %v577 = vmul.f32 %v515, 0.5
        %v578 = vmul.f32 %v518, 0.5
        %v579 = vmul.f32 %v523, 0.5
        %v580 = vmul.f32 %v526, 0.5
        %v581 = vmul.f32 %v531, 0.5
        %v582 = vmul.f32 %v534, 0.5
        %v583 = vmul.f32 %v539, 0.5
        %v584 = vmul.f32 %v542, 0.5
        %v585 = vmul.f32 %v547, 0.5
        %v586 = vmul.f32 %v550, 0.5
        %v587 = vmul.f32 %v555, 0.5
        %v588 = vmul.f32 %v558, 0.5
        %v589 = vmul.f32 %v563, 0.5
        %v590 = vmul.f32 %v566, 0.5
        %v591 = vmul.f32 %v571, 0.5
        %v592 = vmul.f32 %v574, 0.5
        %v593 = vadd.f32 %v577, 0.0
        %v594 = vadd.f32 %v578, 0.0
        %v595 = vadd.f32 %v579, 0.0
        %v596 = vadd.f32 %v580, 0.0
        %v597 = vadd.f32 %v581, 0.0
        %v598 = vadd.f32 %v582, 0.0
        %v599 = vadd.f32 %v583, 0.0
        %v600 = vadd.f32 %v584, 0.0
        %v601 = vadd.f32 %v585, 0.0
        %v602 = vadd.f32 %v586, 0.0
        %v603 = vadd.f32 %v587, 0.0
        %v604 = vadd.f32 %v588, 0.0
        %v605 = vadd.f32 %v589, 0.0
        %v606 = vadd.f32 %v590, 0.0
        %v607 = vadd.f32 %v591, 0.0
        %v608 = vadd.f32 %v592, 0.0
        %vm609 = vcmp.ge.f32.partialorder %v593, 1.0
        %vm610 = vcmp.ge.f32.partialorder %v594, 1.0
        %vm611 = vcmp.ge.f32.partialorder %v595, 1.0
        %vm612 = vcmp.ge.f32.partialorder %v596, 1.0
        %vm613 = vcmp.ge.f32.partialorder %v597, 1.0
        %vm614 = vcmp.ge.f32.partialorder %v598, 1.0
        %vm615 = vcmp.ge.f32.partialorder %v599, 1.0
        %vm616 = vcmp.ge.f32.partialorder %v600, 1.0
        %vm617 = vcmp.ge.f32.partialorder %v601, 1.0
        %vm618 = vcmp.ge.f32.partialorder %v602, 1.0
        %vm619 = vcmp.ge.f32.partialorder %v603, 1.0
        %vm620 = vcmp.ge.f32.partialorder %v604, 1.0
        %vm621 = vcmp.ge.f32.partialorder %v605, 1.0
        %vm622 = vcmp.ge.f32.partialorder %v606, 1.0
        %vm623 = vcmp.ge.f32.partialorder %v607, 1.0
        %vm624 = vcmp.ge.f32.partialorder %v608, 1.0
        %v625 = vsel %vm609, 1.0, 0.0
        %v626 = vsel %vm610, 1.0, 0.0
        %v627 = vsel %vm611, 1.0, 0.0
        %v628 = vsel %vm612, 1.0, 0.0
        %v629 = vsel %vm613, 1.0, 0.0
        %v630 = vsel %vm614, 1.0, 0.0
        %v631 = vsel %vm615, 1.0, 0.0
        %v632 = vsel %vm616, 1.0, 0.0
        %v633 = vsel %vm617, 1.0, 0.0
        %v634 = vsel %vm618, 1.0, 0.0
        %v635 = vsel %vm619, 1.0, 0.0
        %v636 = vsel %vm620, 1.0, 0.0
        %v637 = vsel %vm621, 1.0, 0.0
        %v638 = vsel %vm622, 1.0, 0.0
        %v639 = vsel %vm623, 1.0, 0.0
        %v640 = vsel %vm624, 1.0, 0.0
        %v641 = vpack.c.bf16 %v626, %v625
        %v642 = vpack.c.bf16 %v628, %v627
        %v643 = vpack.c.bf16 %v630, %v629
        %v644 = vpack.c.bf16 %v632, %v631
        %v645 = vpack.c.bf16 %v634, %v633
        %v646 = vpack.c.bf16 %v636, %v635
        %v647 = vpack.c.bf16 %v638, %v637
        %v648 = vpack.c.bf16 %v640, %v639
        %v649 = vsel %vm609, 0.0, %v593
        %v650 = vsel %vm610, 0.0, %v594
        %v651 = vsel %vm611, 0.0, %v595
        %v652 = vsel %vm612, 0.0, %v596
        %v653 = vsel %vm613, 0.0, %v597
        %v654 = vsel %vm614, 0.0, %v598
        %v655 = vsel %vm615, 0.0, %v599
        %v656 = vsel %vm616, 0.0, %v600
        %v657 = vsel %vm617, 0.0, %v601
        %v658 = vsel %vm618, 0.0, %v602
        %v659 = vsel %vm619, 0.0, %v603
        %v660 = vsel %vm620, 0.0, %v604
        %v661 = vsel %vm621, 0.0, %v605
        %v662 = vsel %vm622, 0.0, %v606
        %v663 = vsel %vm623, 0.0, %v607
        %v664 = vsel %vm624, 0.0, %v608
        %s665 = scalar_lea.vmem %s241, 32 [#allocation2]
        %v666 = vld [vmem:[%s665] sm:$0xff]
        %v667 = vld [vmem:[%s665 + $0x8] sm:$0xff]
        %v668 = vld [vmem:[%s665 + $0x10] sm:$0xff]
        %v669 = vld [vmem:[%s665 + $0x18] sm:$0xff]
        %v670 = vpack.c.bf16 %v667, %v666
        %v671 = vpack.c.bf16 %v669, %v668
        %672 = vmatprep.subr.bf16.mxu0 0
        %673 = vmatpush1.bf16.msra.mxu0 %v670
        %674 = vmatprep.subr.bf16.mxu0 0
        %675 = vmatpush1.bf16.msra.mxu0 %v671
        %676 = vmatprep.subr.bf16.mxu0 0
        %677 = vmatpush1.bf16.msra.mxu0 0
        %678 = vmatprep.subr.bf16.mxu0 0
        %679 = vmatpush1.bf16.msra.mxu0 0
        %680 = vmatprep.subr.bf16.mxu0 0
        %681 = vmatpush1.bf16.msra.mxu0 0
        %682 = vmatprep.subr.bf16.mxu0 0
        %683 = vmatpush1.bf16.msra.mxu0 0
        %684 = vmatprep.subr.bf16.mxu0 0
        %685 = vmatpush1.bf16.msra.mxu0 0
        %686 = vmatprep.subr.bf16.mxu0 0
        %687 = vmatpush1.bf16.msra.mxu0 0
        %688 = vmatprep.subr.bf16.mxu0 0
        %689 = vmatpush1.bf16.msra.mxu0 0
        %690 = vmatprep.subr.bf16.mxu0 0
        %691 = vmatpush1.bf16.msra.mxu0 0
        %692 = vmatprep.subr.bf16.mxu0 0
        %693 = vmatpush1.bf16.msra.mxu0 0
        %694 = vmatprep.subr.bf16.mxu0 0
        %695 = vmatpush1.bf16.msra.mxu0 0
        %696 = vmatprep.subr.bf16.mxu0 0
        %697 = vmatpush1.bf16.msra.mxu0 0
        %698 = vmatprep.subr.bf16.mxu0 0
        %699 = vmatpush1.bf16.msra.mxu0 0
        %700 = vmatprep.subr.bf16.mxu0 0
        %701 = vmatpush1.bf16.msra.mxu0 0
        %702 = vmatprep.subr.bf16.mxu0 0
        %703 = vmatpush1.bf16.msra.mxu0 0
        %704 = vmatprep.mubr.bf16.mxu0 0
        %705 = vmatmul.mubr.bf16.gmra.mrb[0].mxu0 %v457
        %v706 = vpop.f32.mrb[0].mxu0
        %v707 = vadd.f32 %v308, %v706
        %v708 = vpop.f32.mrb[0].mxu0
        %v709 = vpop.f32.mrb[0].mxu0
        %v710 = vadd.f32 %v313, %v709
        %v711 = vpop.f32.mrb[0].mxu0
        %712 = vmatprep.mubr.bf16.mxu0 0
        %713 = vmatmul.mubr.bf16.gmra.mrb[0].mxu0 %v460
        %v714 = vpop.f32.mrb[0].mxu0
        %v715 = vadd.f32 %v318, %v714
        %v716 = vpop.f32.mrb[0].mxu0
        %v717 = vpop.f32.mrb[0].mxu0
        %v718 = vadd.f32 %v323, %v717
        %v719 = vpop.f32.mrb[0].mxu0
        %720 = vmatprep.mubr.bf16.mxu0 0
        %721 = vmatmul.mubr.bf16.gmra.mrb[0].mxu0 %v463
        %v722 = vpop.f32.mrb[0].mxu0
        %v723 = vadd.f32 %v328, %v722
        %v724 = vpop.f32.mrb[0].mxu0
        %v725 = vpop.f32.mrb[0].mxu0
        %v726 = vadd.f32 %v333, %v725
        %v727 = vpop.f32.mrb[0].mxu0
        %728 = vmatprep.mubr.bf16.mxu0 0
        %729 = vmatmul.mubr.bf16.gmra.mrb[0].mxu0 %v466
        %v730 = vpop.f32.mrb[0].mxu0
        %v731 = vadd.f32 %v338, %v730
        %v732 = vpop.f32.mrb[0].mxu0
        %v733 = vpop.f32.mrb[0].mxu0
        %v734 = vadd.f32 %v343, %v733
        %v735 = vpop.f32.mrb[0].mxu0
        %736 = vmatprep.mubr.bf16.mxu0 0
        %737 = vmatmul.mubr.bf16.gmra.mrb[0].mxu0 %v469
        %v738 = vpop.f32.mrb[0].mxu0
        %v739 = vadd.f32 %v348, %v738
        %v740 = vpop.f32.mrb[0].mxu0
        %v741 = vpop.f32.mrb[0].mxu0
        %v742 = vadd.f32 %v353, %v741
        %v743 = vpop.f32.mrb[0].mxu0
        %744 = vmatprep.mubr.bf16.mxu0 0
        %745 = vmatmul.mubr.bf16.gmra.mrb[0].mxu0 %v472
        %v746 = vpop.f32.mrb[0].mxu0
        %v747 = vadd.f32 %v358, %v746
        %v748 = vpop.f32.mrb[0].mxu0
        %v749 = vpop.f32.mrb[0].mxu0
        %v750 = vadd.f32 %v363, %v749
        %v751 = vpop.f32.mrb[0].mxu0
        %752 = vmatprep.mubr.bf16.mxu0 0
        %753 = vmatmul.mubr.bf16.gmra.mrb[0].mxu0 %v475
        %v754 = vpop.f32.mrb[0].mxu0
        %v755 = vadd.f32 %v368, %v754
        %v756 = vpop.f32.mrb[0].mxu0
        %v757 = vpop.f32.mrb[0].mxu0
        %v758 = vadd.f32 %v373, %v757
        %v759 = vpop.f32.mrb[0].mxu0
        %760 = vmatprep.mubr.bf16.mxu0 0
        %761 = vmatmul.mubr.bf16.gmra.mrb[0].mxu0 %v478
        %v762 = vpop.f32.mrb[0].mxu0
        %v763 = vadd.f32 %v378, %v762
        %v764 = vpop.f32.mrb[0].mxu0
        %v765 = vpop.f32.mrb[0].mxu0
        %v766 = vadd.f32 %v383, %v765
        %v767 = vpop.f32.mrb[0].mxu0
        %768 = vdwg.mxu0
        %v769 = vsub.f32 %v707, %v649
        %v770 = vsub.f32 %v710, %v650
        %v771 = vsub.f32 %v715, %v651
        %v772 = vsub.f32 %v718, %v652
        %v773 = vsub.f32 %v723, %v653
        %v774 = vsub.f32 %v726, %v654
        %v775 = vsub.f32 %v731, %v655
        %v776 = vsub.f32 %v734, %v656
        %v777 = vsub.f32 %v739, %v657
        %v778 = vsub.f32 %v742, %v658
        %v779 = vsub.f32 %v747, %v659
        %v780 = vsub.f32 %v750, %v660
        %v781 = vsub.f32 %v755, %v661
        %v782 = vsub.f32 %v758, %v662
        %v783 = vsub.f32 %v763, %v663
        %v784 = vsub.f32 %v766, %v664
        %v785 = vmul.f32 %v769, 0.5
        %v786 = vmul.f32 %v770, 0.5
        %v787 = vmul.f32 %v771, 0.5
        %v788 = vmul.f32 %v772, 0.5
        %v789 = vmul.f32 %v773, 0.5
        %v790 = vmul.f32 %v774, 0.5
        %v791 = vmul.f32 %v775, 0.5
        %v792 = vmul.f32 %v776, 0.5
        %v793 = vmul.f32 %v777, 0.5
        %v794 = vmul.f32 %v778, 0.5
        %v795 = vmul.f32 %v779, 0.5
        %v796 = vmul.f32 %v780, 0.5
        %v797 = vmul.f32 %v781, 0.5
        %v798 = vmul.f32 %v782, 0.5
        %v799 = vmul.f32 %v783, 0.5
        %v800 = vmul.f32 %v784, 0.5
        %v801 = vadd.f32 %v649, %v785
        %v802 = vadd.f32 %v650, %v786
        %v803 = vadd.f32 %v651, %v787
        %v804 = vadd.f32 %v652, %v788
        %v805 = vadd.f32 %v653, %v789
        %v806 = vadd.f32 %v654, %v790
        %v807 = vadd.f32 %v655, %v791
        %v808 = vadd.f32 %v656, %v792
        %v809 = vadd.f32 %v657, %v793
        %v810 = vadd.f32 %v658, %v794
        %v811 = vadd.f32 %v659, %v795
        %v812 = vadd.f32 %v660, %v796
        %v813 = vadd.f32 %v661, %v797
        %v814 = vadd.f32 %v662, %v798
        %v815 = vadd.f32 %v663, %v799
        %v816 = vadd.f32 %v664, %v800
        %vm817 = vcmp.ge.f32.partialorder %v801, 1.0
        %vm818 = vcmp.ge.f32.partialorder %v802, 1.0
        %vm819 = vcmp.ge.f32.partialorder %v803, 1.0
        %vm820 = vcmp.ge.f32.partialorder %v804, 1.0
        %vm821 = vcmp.ge.f32.partialorder %v805, 1.0
        %vm822 = vcmp.ge.f32.partialorder %v806, 1.0
        %vm823 = vcmp.ge.f32.partialorder %v807, 1.0
        %vm824 = vcmp.ge.f32.partialorder %v808, 1.0
        %vm825 = vcmp.ge.f32.partialorder %v809, 1.0
        %vm826 = vcmp.ge.f32.partialorder %v810, 1.0
        %vm827 = vcmp.ge.f32.partialorder %v811, 1.0
        %vm828 = vcmp.ge.f32.partialorder %v812, 1.0
        %vm829 = vcmp.ge.f32.partialorder %v813, 1.0
        %vm830 = vcmp.ge.f32.partialorder %v814, 1.0
        %vm831 = vcmp.ge.f32.partialorder %v815, 1.0
        %vm832 = vcmp.ge.f32.partialorder %v816, 1.0
        %v833 = vsel %vm817, 1.0, 0.0
        %v834 = vsel %vm818, 1.0, 0.0
        %v835 = vsel %vm819, 1.0, 0.0
        %v836 = vsel %vm820, 1.0, 0.0
        %v837 = vsel %vm821, 1.0, 0.0
        %v838 = vsel %vm822, 1.0, 0.0
        %v839 = vsel %vm823, 1.0, 0.0
        %v840 = vsel %vm824, 1.0, 0.0
        %v841 = vsel %vm825, 1.0, 0.0
        %v842 = vsel %vm826, 1.0, 0.0
        %v843 = vsel %vm827, 1.0, 0.0
        %v844 = vsel %vm828, 1.0, 0.0
        %v845 = vsel %vm829, 1.0, 0.0
        %v846 = vsel %vm830, 1.0, 0.0
        %v847 = vsel %vm831, 1.0, 0.0
        %v848 = vsel %vm832, 1.0, 0.0
        %v849 = vpack.c.bf16 %v834, %v833
        %v850 = vpack.c.bf16 %v836, %v835
        %v851 = vpack.c.bf16 %v838, %v837
        %v852 = vpack.c.bf16 %v840, %v839
        %v853 = vpack.c.bf16 %v842, %v841
        %v854 = vpack.c.bf16 %v844, %v843
        %v855 = vpack.c.bf16 %v846, %v845
        %v856 = vpack.c.bf16 %v848, %v847
        %v857 = vsel %vm817, 0.0, %v801
        %v858 = vsel %vm818, 0.0, %v802
        %v859 = vsel %vm819, 0.0, %v803
        %v860 = vsel %vm820, 0.0, %v804
        %v861 = vsel %vm821, 0.0, %v805
        %v862 = vsel %vm822, 0.0, %v806
        %v863 = vsel %vm823, 0.0, %v807
        %v864 = vsel %vm824, 0.0, %v808
        %v865 = vsel %vm825, 0.0, %v809
        %v866 = vsel %vm826, 0.0, %v810
        %v867 = vsel %vm827, 0.0, %v811
        %v868 = vsel %vm828, 0.0, %v812
        %v869 = vsel %vm829, 0.0, %v813
        %v870 = vsel %vm830, 0.0, %v814
        %v871 = vsel %vm831, 0.0, %v815
        %v872 = vsel %vm832, 0.0, %v816
        %s873 = scalar_lea.vmem %s241, 64 [#allocation2]
        %v874 = vld [vmem:[%s873] sm:$0xff]
        %v875 = vld [vmem:[%s873 + $0x8] sm:$0xff]
        %v876 = vld [vmem:[%s873 + $0x10] sm:$0xff]
        %v877 = vld [vmem:[%s873 + $0x18] sm:$0xff]
        %v878 = vpack.c.bf16 %v875, %v874
        %v879 = vpack.c.bf16 %v877, %v876
        %880 = vmatprep.subr.bf16.mxu0 0
        %881 = vmatpush1.bf16.msra.mxu0 %v878
        %882 = vmatprep.subr.bf16.mxu0 0
        %883 = vmatpush1.bf16.msra.mxu0 %v879
        %884 = vmatprep.subr.bf16.mxu0 0
        %885 = vmatpush1.bf16.msra.mxu0 0
        %886 = vmatprep.subr.bf16.mxu0 0
        %887 = vmatpush1.bf16.msra.mxu0 0
        %888 = vmatprep.subr.bf16.mxu0 0
        %889 = vmatpush1.bf16.msra.mxu0 0
        %890 = vmatprep.subr.bf16.mxu0 0
        %891 = vmatpush1.bf16.msra.mxu0 0
        %892 = vmatprep.subr.bf16.mxu0 0
        %893 = vmatpush1.bf16.msra.mxu0 0
        %894 = vmatprep.subr.bf16.mxu0 0
        %895 = vmatpush1.bf16.msra.mxu0 0
        %896 = vmatprep.subr.bf16.mxu0 0
        %897 = vmatpush1.bf16.msra.mxu0 0
        %898 = vmatprep.subr.bf16.mxu0 0
        %899 = vmatpush1.bf16.msra.mxu0 0
        %900 = vmatprep.subr.bf16.mxu0 0
        %901 = vmatpush1.bf16.msra.mxu0 0
        %902 = vmatprep.subr.bf16.mxu0 0
        %903 = vmatpush1.bf16.msra.mxu0 0
        %904 = vmatprep.subr.bf16.mxu0 0
        %905 = vmatpush1.bf16.msra.mxu0 0
        %906 = vmatprep.subr.bf16.mxu0 0
        %907 = vmatpush1.bf16.msra.mxu0 0
        %908 = vmatprep.subr.bf16.mxu0 0
        %909 = vmatpush1.bf16.msra.mxu0 0
        %910 = vmatprep.subr.bf16.mxu0 0
        %911 = vmatpush1.bf16.msra.mxu0 0
        %912 = vmatprep.mubr.bf16.mxu0 0
        %913 = vmatmul.mubr.bf16.gmra.mrb[0].mxu0 %v457
        %v914 = vpop.f32.mrb[0].mxu0
        %v915 = vadd.f32 %v308, %v914
        %v916 = vpop.f32.mrb[0].mxu0
        %v917 = vpop.f32.mrb[0].mxu0
        %v918 = vadd.f32 %v313, %v917
        %v919 = vpop.f32.mrb[0].mxu0
        %920 = vmatprep.mubr.bf16.mxu0 0
        %921 = vmatmul.mubr.bf16.gmra.mrb[0].mxu0 %v460
        %v922 = vpop.f32.mrb[0].mxu0
        %v923 = vadd.f32 %v318, %v922
        %v924 = vpop.f32.mrb[0].mxu0
        %v925 = vpop.f32.mrb[0].mxu0
        %v926 = vadd.f32 %v323, %v925
        %v927 = vpop.f32.mrb[0].mxu0
        %928 = vmatprep.mubr.bf16.mxu0 0
        %929 = vmatmul.mubr.bf16.gmra.mrb[0].mxu0 %v463
        %v930 = vpop.f32.mrb[0].mxu0
        %v931 = vadd.f32 %v328, %v930
        %v932 = vpop.f32.mrb[0].mxu0
        %v933 = vpop.f32.mrb[0].mxu0
        %v934 = vadd.f32 %v333, %v933
        %v935 = vpop.f32.mrb[0].mxu0
        %936 = vmatprep.mubr.bf16.mxu0 0
        %937 = vmatmul.mubr.bf16.gmra.mrb[0].mxu0 %v466
        %v938 = vpop.f32.mrb[0].mxu0
        %v939 = vadd.f32 %v338, %v938
        %v940 = vpop.f32.mrb[0].mxu0
        %v941 = vpop.f32.mrb[0].mxu0
        %v942 = vadd.f32 %v343, %v941
        %v943 = vpop.f32.mrb[0].mxu0
        %944 = vmatprep.mubr.bf16.mxu0 0
        %945 = vmatmul.mubr.bf16.gmra.mrb[0].mxu0 %v469
        %v946 = vpop.f32.mrb[0].mxu0
        %v947 = vadd.f32 %v348, %v946
        %v948 = vpop.f32.mrb[0].mxu0
        %v949 = vpop.f32.mrb[0].mxu0
        %v950 = vadd.f32 %v353, %v949
        %v951 = vpop.f32.mrb[0].mxu0
        %952 = vmatprep.mubr.bf16.mxu0 0
        %953 = vmatmul.mubr.bf16.gmra.mrb[0].mxu0 %v472
        %v954 = vpop.f32.mrb[0].mxu0
        %v955 = vadd.f32 %v358, %v954
        %v956 = vpop.f32.mrb[0].mxu0
        %v957 = vpop.f32.mrb[0].mxu0
        %v958 = vadd.f32 %v363, %v957
        %v959 = vpop.f32.mrb[0].mxu0
        %960 = vmatprep.mubr.bf16.mxu0 0
        %961 = vmatmul.mubr.bf16.gmra.mrb[0].mxu0 %v475
        %v962 = vpop.f32.mrb[0].mxu0
        %v963 = vadd.f32 %v368, %v962
        %v964 = vpop.f32.mrb[0].mxu0
        %v965 = vpop.f32.mrb[0].mxu0
        %v966 = vadd.f32 %v373, %v965
        %v967 = vpop.f32.mrb[0].mxu0
        %968 = vmatprep.mubr.bf16.mxu0 0
        %969 = vmatmul.mubr.bf16.gmra.mrb[0].mxu0 %v478
        %v970 = vpop.f32.mrb[0].mxu0
        %v971 = vadd.f32 %v378, %v970
        %v972 = vpop.f32.mrb[0].mxu0
        %v973 = vpop.f32.mrb[0].mxu0
        %v974 = vadd.f32 %v383, %v973
        %v975 = vpop.f32.mrb[0].mxu0
        %976 = vdwg.mxu0
        %v977 = vsub.f32 %v915, %v857
        %v978 = vsub.f32 %v918, %v858
        %v979 = vsub.f32 %v923, %v859
        %v980 = vsub.f32 %v926, %v860
        %v981 = vsub.f32 %v931, %v861
        %v982 = vsub.f32 %v934, %v862
        %v983 = vsub.f32 %v939, %v863
        %v984 = vsub.f32 %v942, %v864
        %v985 = vsub.f32 %v947, %v865
        %v986 = vsub.f32 %v950, %v866
        %v987 = vsub.f32 %v955, %v867
        %v988 = vsub.f32 %v958, %v868
        %v989 = vsub.f32 %v963, %v869
        %v990 = vsub.f32 %v966, %v870
        %v991 = vsub.f32 %v971, %v871
        %v992 = vsub.f32 %v974, %v872
        %v993 = vmul.f32 %v977, 0.5
        %v994 = vmul.f32 %v978, 0.5
        %v995 = vmul.f32 %v979, 0.5
        %v996 = vmul.f32 %v980, 0.5
        %v997 = vmul.f32 %v981, 0.5
        %v998 = vmul.f32 %v982, 0.5
        %v999 = vmul.f32 %v983, 0.5
        %v1000 = vmul.f32 %v984, 0.5
        %v1001 = vmul.f32 %v985, 0.5
        %v1002 = vmul.f32 %v986, 0.5
        %v1003 = vmul.f32 %v987, 0.5
        %v1004 = vmul.f32 %v988, 0.5
        %v1005 = vmul.f32 %v989, 0.5
        %v1006 = vmul.f32 %v990, 0.5
        %v1007 = vmul.f32 %v991, 0.5
        %v1008 = vmul.f32 %v992, 0.5
        %v1009 = vadd.f32 %v857, %v993
        %v1010 = vadd.f32 %v858, %v994
        %v1011 = vadd.f32 %v859, %v995
        %v1012 = vadd.f32 %v860, %v996
        %v1013 = vadd.f32 %v861, %v997
        %v1014 = vadd.f32 %v862, %v998
        %v1015 = vadd.f32 %v863, %v999
        %v1016 = vadd.f32 %v864, %v1000
        %v1017 = vadd.f32 %v865, %v1001
        %v1018 = vadd.f32 %v866, %v1002
        %v1019 = vadd.f32 %v867, %v1003
        %v1020 = vadd.f32 %v868, %v1004
        %v1021 = vadd.f32 %v869, %v1005
        %v1022 = vadd.f32 %v870, %v1006
        %v1023 = vadd.f32 %v871, %v1007
        %v1024 = vadd.f32 %v872, %v1008
        %vm1025 = vcmp.ge.f32.partialorder %v1009, 1.0
        %vm1026 = vcmp.ge.f32.partialorder %v1010, 1.0
        %vm1027 = vcmp.ge.f32.partialorder %v1011, 1.0
        %vm1028 = vcmp.ge.f32.partialorder %v1012, 1.0
        %vm1029 = vcmp.ge.f32.partialorder %v1013, 1.0
        %vm1030 = vcmp.ge.f32.partialorder %v1014, 1.0
        %vm1031 = vcmp.ge.f32.partialorder %v1015, 1.0
        %vm1032 = vcmp.ge.f32.partialorder %v1016, 1.0
        %vm1033 = vcmp.ge.f32.partialorder %v1017, 1.0
        %vm1034 = vcmp.ge.f32.partialorder %v1018, 1.0
        %vm1035 = vcmp.ge.f32.partialorder %v1019, 1.0
        %vm1036 = vcmp.ge.f32.partialorder %v1020, 1.0
        %vm1037 = vcmp.ge.f32.partialorder %v1021, 1.0
        %vm1038 = vcmp.ge.f32.partialorder %v1022, 1.0
        %vm1039 = vcmp.ge.f32.partialorder %v1023, 1.0
        %vm1040 = vcmp.ge.f32.partialorder %v1024, 1.0
        %v1041 = vsel %vm1025, 1.0, 0.0
        %v1042 = vsel %vm1026, 1.0, 0.0
        %v1043 = vsel %vm1027, 1.0, 0.0
        %v1044 = vsel %vm1028, 1.0, 0.0
        %v1045 = vsel %vm1029, 1.0, 0.0
        %v1046 = vsel %vm1030, 1.0, 0.0
        %v1047 = vsel %vm1031, 1.0, 0.0
        %v1048 = vsel %vm1032, 1.0, 0.0
        %v1049 = vsel %vm1033, 1.0, 0.0
        %v1050 = vsel %vm1034, 1.0, 0.0
        %v1051 = vsel %vm1035, 1.0, 0.0
        %v1052 = vsel %vm1036, 1.0, 0.0
        %v1053 = vsel %vm1037, 1.0, 0.0
        %v1054 = vsel %vm1038, 1.0, 0.0
        %v1055 = vsel %vm1039, 1.0, 0.0
        %v1056 = vsel %vm1040, 1.0, 0.0
        %v1057 = vpack.c.bf16 %v1042, %v1041
        %v1058 = vpack.c.bf16 %v1044, %v1043
        %v1059 = vpack.c.bf16 %v1046, %v1045
        %v1060 = vpack.c.bf16 %v1048, %v1047
        %v1061 = vpack.c.bf16 %v1050, %v1049
        %v1062 = vpack.c.bf16 %v1052, %v1051
        %v1063 = vpack.c.bf16 %v1054, %v1053
        %v1064 = vpack.c.bf16 %v1056, %v1055
        %v1065 = vsel %vm1025, 0.0, %v1009
        %v1066 = vsel %vm1026, 0.0, %v1010
        %v1067 = vsel %vm1027, 0.0, %v1011
        %v1068 = vsel %vm1028, 0.0, %v1012
        %v1069 = vsel %vm1029, 0.0, %v1013
        %v1070 = vsel %vm1030, 0.0, %v1014
        %v1071 = vsel %vm1031, 0.0, %v1015
        %v1072 = vsel %vm1032, 0.0, %v1016
        %v1073 = vsel %vm1033, 0.0, %v1017
        %v1074 = vsel %vm1034, 0.0, %v1018
        %v1075 = vsel %vm1035, 0.0, %v1019
        %v1076 = vsel %vm1036, 0.0, %v1020
        %v1077 = vsel %vm1037, 0.0, %v1021
        %v1078 = vsel %vm1038, 0.0, %v1022
        %v1079 = vsel %vm1039, 0.0, %v1023
        %v1080 = vsel %vm1040, 0.0, %v1024
        %s1081 = scalar_lea.vmem %s241, 96 [#allocation2]
        %v1082 = vld [vmem:[%s1081] sm:$0xff]
        %v1083 = vld [vmem:[%s1081 + $0x8] sm:$0xff]
        %v1084 = vld [vmem:[%s1081 + $0x10] sm:$0xff]
        %v1085 = vld [vmem:[%s1081 + $0x18] sm:$0xff]
        %v1086 = vpack.c.bf16 %v1083, %v1082
        %v1087 = vpack.c.bf16 %v1085, %v1084
        %1088 = vmatprep.subr.bf16.mxu0 0
        %1089 = vmatpush1.bf16.msra.mxu0 %v1086
        %1090 = vmatprep.subr.bf16.mxu0 0
        %1091 = vmatpush1.bf16.msra.mxu0 %v1087
        %1092 = vmatprep.subr.bf16.mxu0 0
        %1093 = vmatpush1.bf16.msra.mxu0 0
        %1094 = vmatprep.subr.bf16.mxu0 0
        %1095 = vmatpush1.bf16.msra.mxu0 0
        %1096 = vmatprep.subr.bf16.mxu0 0
        %1097 = vmatpush1.bf16.msra.mxu0 0
        %1098 = vmatprep.subr.bf16.mxu0 0
        %1099 = vmatpush1.bf16.msra.mxu0 0
        %1100 = vmatprep.subr.bf16.mxu0 0
        %1101 = vmatpush1.bf16.msra.mxu0 0
        %1102 = vmatprep.subr.bf16.mxu0 0
        %1103 = vmatpush1.bf16.msra.mxu0 0
        %1104 = vmatprep.subr.bf16.mxu0 0
        %1105 = vmatpush1.bf16.msra.mxu0 0
        %1106 = vmatprep.subr.bf16.mxu0 0
        %1107 = vmatpush1.bf16.msra.mxu0 0
        %1108 = vmatprep.subr.bf16.mxu0 0
        %1109 = vmatpush1.bf16.msra.mxu0 0
        %1110 = vmatprep.subr.bf16.mxu0 0
        %1111 = vmatpush1.bf16.msra.mxu0 0
        %1112 = vmatprep.subr.bf16.mxu0 0
        %1113 = vmatpush1.bf16.msra.mxu0 0
        %1114 = vmatprep.subr.bf16.mxu0 0
        %1115 = vmatpush1.bf16.msra.mxu0 0
        %1116 = vmatprep.subr.bf16.mxu0 0
        %1117 = vmatpush1.bf16.msra.mxu0 0
        %1118 = vmatprep.subr.bf16.mxu0 0
        %1119 = vmatpush1.bf16.msra.mxu0 0
        %1120 = vmatprep.mubr.bf16.mxu0 0
        %1121 = vmatmul.mubr.bf16.gmra.mrb[0].mxu0 %v457
        %v1122 = vpop.f32.mrb[0].mxu0
        %v1123 = vadd.f32 %v308, %v1122
        %v1124 = vpop.f32.mrb[0].mxu0
        %v1125 = vpop.f32.mrb[0].mxu0
        %v1126 = vadd.f32 %v313, %v1125
        %v1127 = vpop.f32.mrb[0].mxu0
        %1128 = vmatprep.mubr.bf16.mxu0 0
        %1129 = vmatmul.mubr.bf16.gmra.mrb[0].mxu0 %v460
        %v1130 = vpop.f32.mrb[0].mxu0
        %v1131 = vadd.f32 %v318, %v1130
        %v1132 = vpop.f32.mrb[0].mxu0
        %v1133 = vpop.f32.mrb[0].mxu0
        %v1134 = vadd.f32 %v323, %v1133
        %v1135 = vpop.f32.mrb[0].mxu0
        %1136 = vmatprep.mubr.bf16.mxu0 0
        %1137 = vmatmul.mubr.bf16.gmra.mrb[0].mxu0 %v463
        %v1138 = vpop.f32.mrb[0].mxu0
        %v1139 = vadd.f32 %v328, %v1138
        %v1140 = vpop.f32.mrb[0].mxu0
        %v1141 = vpop.f32.mrb[0].mxu0
        %v1142 = vadd.f32 %v333, %v1141
        %v1143 = vpop.f32.mrb[0].mxu0
        %1144 = vmatprep.mubr.bf16.mxu0 0
        %1145 = vmatmul.mubr.bf16.gmra.mrb[0].mxu0 %v466
        %v1146 = vpop.f32.mrb[0].mxu0
        %v1147 = vadd.f32 %v338, %v1146
        %v1148 = vpop.f32.mrb[0].mxu0
        %v1149 = vpop.f32.mrb[0].mxu0
        %v1150 = vadd.f32 %v343, %v1149
        %v1151 = vpop.f32.mrb[0].mxu0
        %1152 = vmatprep.mubr.bf16.mxu0 0
        %1153 = vmatmul.mubr.bf16.gmra.mrb[0].mxu0 %v469
        %v1154 = vpop.f32.mrb[0].mxu0
        %v1155 = vadd.f32 %v348, %v1154
        %v1156 = vpop.f32.mrb[0].mxu0
        %v1157 = vpop.f32.mrb[0].mxu0
        %v1158 = vadd.f32 %v353, %v1157
        %v1159 = vpop.f32.mrb[0].mxu0
        %1160 = vmatprep.mubr.bf16.mxu0 0
        %1161 = vmatmul.mubr.bf16.gmra.mrb[0].mxu0 %v472
        %v1162 = vpop.f32.mrb[0].mxu0
        %v1163 = vadd.f32 %v358, %v1162
        %v1164 = vpop.f32.mrb[0].mxu0
        %v1165 = vpop.f32.mrb[0].mxu0
        %v1166 = vadd.f32 %v363, %v1165
        %v1167 = vpop.f32.mrb[0].mxu0
        %1168 = vmatprep.mubr.bf16.mxu0 0
        %1169 = vmatmul.mubr.bf16.gmra.mrb[0].mxu0 %v475
        %v1170 = vpop.f32.mrb[0].mxu0
        %v1171 = vadd.f32 %v368, %v1170
        %v1172 = vpop.f32.mrb[0].mxu0
        %v1173 = vpop.f32.mrb[0].mxu0
        %v1174 = vadd.f32 %v373, %v1173
        %v1175 = vpop.f32.mrb[0].mxu0
        %1176 = vmatprep.mubr.bf16.mxu0 0
        %1177 = vmatmul.mubr.bf16.gmra.mrb[0].mxu0 %v478
        %v1178 = vpop.f32.mrb[0].mxu0
        %v1179 = vadd.f32 %v378, %v1178
        %v1180 = vpop.f32.mrb[0].mxu0
        %v1181 = vpop.f32.mrb[0].mxu0
        %v1182 = vadd.f32 %v383, %v1181
        %v1183 = vpop.f32.mrb[0].mxu0
        %1184 = vdwg.mxu0
        %v1185 = vsub.f32 %v1123, %v1065
        %v1186 = vsub.f32 %v1126, %v1066
        %v1187 = vsub.f32 %v1131, %v1067
        %v1188 = vsub.f32 %v1134, %v1068
        %v1189 = vsub.f32 %v1139, %v1069
        %v1190 = vsub.f32 %v1142, %v1070
        %v1191 = vsub.f32 %v1147, %v1071
        %v1192 = vsub.f32 %v1150, %v1072
        %v1193 = vsub.f32 %v1155, %v1073
        %v1194 = vsub.f32 %v1158, %v1074
        %v1195 = vsub.f32 %v1163, %v1075
        %v1196 = vsub.f32 %v1166, %v1076
        %v1197 = vsub.f32 %v1171, %v1077
        %v1198 = vsub.f32 %v1174, %v1078
        %v1199 = vsub.f32 %v1179, %v1079
        %v1200 = vsub.f32 %v1182, %v1080
        %v1201 = vmul.f32 %v1185, 0.5
        %v1202 = vmul.f32 %v1186, 0.5
        %v1203 = vmul.f32 %v1187, 0.5
        %v1204 = vmul.f32 %v1188, 0.5
        %v1205 = vmul.f32 %v1189, 0.5
        %v1206 = vmul.f32 %v1190, 0.5
        %v1207 = vmul.f32 %v1191, 0.5
        %v1208 = vmul.f32 %v1192, 0.5
        %v1209 = vmul.f32 %v1193, 0.5
        %v1210 = vmul.f32 %v1194, 0.5
        %v1211 = vmul.f32 %v1195, 0.5
        %v1212 = vmul.f32 %v1196, 0.5
        %v1213 = vmul.f32 %v1197, 0.5
        %v1214 = vmul.f32 %v1198, 0.5
        %v1215 = vmul.f32 %v1199, 0.5
        %v1216 = vmul.f32 %v1200, 0.5
        %v1217 = vadd.f32 %v1065, %v1201
        %v1218 = vadd.f32 %v1066, %v1202
        %v1219 = vadd.f32 %v1067, %v1203
        %v1220 = vadd.f32 %v1068, %v1204
        %v1221 = vadd.f32 %v1069, %v1205
        %v1222 = vadd.f32 %v1070, %v1206
        %v1223 = vadd.f32 %v1071, %v1207
        %v1224 = vadd.f32 %v1072, %v1208
        %v1225 = vadd.f32 %v1073, %v1209
        %v1226 = vadd.f32 %v1074, %v1210
        %v1227 = vadd.f32 %v1075, %v1211
        %v1228 = vadd.f32 %v1076, %v1212
        %v1229 = vadd.f32 %v1077, %v1213
        %v1230 = vadd.f32 %v1078, %v1214
        %v1231 = vadd.f32 %v1079, %v1215
        %v1232 = vadd.f32 %v1080, %v1216
        %vm1233 = vcmp.ge.f32.partialorder %v1217, 1.0
        %vm1234 = vcmp.ge.f32.partialorder %v1218, 1.0
        %vm1235 = vcmp.ge.f32.partialorder %v1219, 1.0
        %vm1236 = vcmp.ge.f32.partialorder %v1220, 1.0
        %vm1237 = vcmp.ge.f32.partialorder %v1221, 1.0
        %vm1238 = vcmp.ge.f32.partialorder %v1222, 1.0
        %vm1239 = vcmp.ge.f32.partialorder %v1223, 1.0
        %vm1240 = vcmp.ge.f32.partialorder %v1224, 1.0
        %vm1241 = vcmp.ge.f32.partialorder %v1225, 1.0
        %vm1242 = vcmp.ge.f32.partialorder %v1226, 1.0
        %vm1243 = vcmp.ge.f32.partialorder %v1227, 1.0
        %vm1244 = vcmp.ge.f32.partialorder %v1228, 1.0
        %vm1245 = vcmp.ge.f32.partialorder %v1229, 1.0
        %vm1246 = vcmp.ge.f32.partialorder %v1230, 1.0
        %vm1247 = vcmp.ge.f32.partialorder %v1231, 1.0
        %vm1248 = vcmp.ge.f32.partialorder %v1232, 1.0
        %v1249 = vsel %vm1233, 1.0, 0.0
        %v1250 = vsel %vm1234, 1.0, 0.0
        %v1251 = vsel %vm1235, 1.0, 0.0
        %v1252 = vsel %vm1236, 1.0, 0.0
        %v1253 = vsel %vm1237, 1.0, 0.0
        %v1254 = vsel %vm1238, 1.0, 0.0
        %v1255 = vsel %vm1239, 1.0, 0.0
        %v1256 = vsel %vm1240, 1.0, 0.0
        %v1257 = vsel %vm1241, 1.0, 0.0
        %v1258 = vsel %vm1242, 1.0, 0.0
        %v1259 = vsel %vm1243, 1.0, 0.0
        %v1260 = vsel %vm1244, 1.0, 0.0
        %v1261 = vsel %vm1245, 1.0, 0.0
        %v1262 = vsel %vm1246, 1.0, 0.0
        %v1263 = vsel %vm1247, 1.0, 0.0
        %v1264 = vsel %vm1248, 1.0, 0.0
        %v1265 = vpack.c.bf16 %v1250, %v1249
        %v1266 = vpack.c.bf16 %v1252, %v1251
        %v1267 = vpack.c.bf16 %v1254, %v1253
        %v1268 = vpack.c.bf16 %v1256, %v1255
        %v1269 = vpack.c.bf16 %v1258, %v1257
        %v1270 = vpack.c.bf16 %v1260, %v1259
        %v1271 = vpack.c.bf16 %v1262, %v1261
        %v1272 = vpack.c.bf16 %v1264, %v1263
        %v1277 = vunpack.c.l.b16 %v285
        %v1278 = vunpack.c.l.b16 %v286
        %v1279 = vunpack.c.l.b16 %v287
        %v1280 = vunpack.c.l.b16 %v288
        %v1281 = vpack.c.b16 %v1278, %v1277
        %v1282 = vpack.c.b16 %v1280, %v1279
        %1285 = vmatprep.subr.bf16.mxu0 0
        %1286 = vmatpush1.bf16.msra.mxu0 %v641
        %1287 = vmatprep.subr.bf16.mxu0 0
        %1288 = vmatpush1.bf16.msra.mxu0 %v642
        %1289 = vmatprep.subr.bf16.mxu0 0
        %1290 = vmatpush1.bf16.msra.mxu0 %v643
        %1291 = vmatprep.subr.bf16.mxu0 0
        %1292 = vmatpush1.bf16.msra.mxu0 %v644
        %1293 = vmatprep.subr.bf16.mxu0 0
        %1294 = vmatpush1.bf16.msra.mxu0 %v645
        %1295 = vmatprep.subr.bf16.mxu0 0
        %1296 = vmatpush1.bf16.msra.mxu0 %v646
        %1297 = vmatprep.subr.bf16.mxu0 0
        %1298 = vmatpush1.bf16.msra.mxu0 %v647
        %1299 = vmatprep.subr.bf16.mxu0 0
        %1300 = vmatpush1.bf16.msra.mxu0 %v648
        %1301 = vmatprep.subr.bf16.mxu0 0
        %1302 = vmatpush1.bf16.msra.mxu0 0
        %1303 = vmatprep.subr.bf16.mxu0 0
        %1304 = vmatpush1.bf16.msra.mxu0 0
        %1305 = vmatprep.subr.bf16.mxu0 0
        %1306 = vmatpush1.bf16.msra.mxu0 0
        %1307 = vmatprep.subr.bf16.mxu0 0
        %1308 = vmatpush1.bf16.msra.mxu0 0
        %1309 = vmatprep.subr.bf16.mxu0 0
        %1310 = vmatpush1.bf16.msra.mxu0 0
        %1311 = vmatprep.subr.bf16.mxu0 0
        %1312 = vmatpush1.bf16.msra.mxu0 0
        %1313 = vmatprep.subr.bf16.mxu0 0
        %1314 = vmatpush1.bf16.msra.mxu0 0
        %1315 = vmatprep.subr.bf16.mxu0 0
        %1316 = vmatpush1.bf16.msra.mxu0 0
        %1317 = vmatprep.mubr.bf16.mxu0 0
        %1318 = vmatmul.mubr.bf16.gmra.mrb[0].mxu0 %v1281
        %v1319 = vpop.f32.mrb[0].mxu0
        %v1320 = vadd.f32 %v392, %v1319
        %v1321 = vpop.f32.mrb[0].mxu0
        %v1322 = vpop.f32.mrb[0].mxu0
        %v1323 = vadd.f32 %v397, %v1322
        %v1324 = vpop.f32.mrb[0].mxu0
        %1325 = vmatprep.mubr.bf16.mxu0 0
        %1326 = vmatmul.mubr.bf16.gmra.mrb[0].mxu0 %v1282
        %v1327 = vpop.f32.mrb[0].mxu0
        %v1328 = vadd.f32 %v402, %v1327
        %v1329 = vpop.f32.mrb[0].mxu0
        %v1330 = vpop.f32.mrb[0].mxu0
        %v1331 = vadd.f32 %v407, %v1330
        %v1332 = vpop.f32.mrb[0].mxu0
        %1333 = vdwg.mxu0
        %v1334 = vmul.f32 %v1320, 0.5
        %v1335 = vmul.f32 %v1323, 0.5
        %v1336 = vmul.f32 %v1328, 0.5
        %v1337 = vmul.f32 %v1331, 0.5
        %v1338 = vadd.f32 %v1334, 0.0
        %v1339 = vadd.f32 %v1335, 0.0
        %v1340 = vadd.f32 %v1336, 0.0
        %v1341 = vadd.f32 %v1337, 0.0
        %vm1342 = vcmp.ge.f32.partialorder %v1338, 1.0
        %vm1343 = vcmp.ge.f32.partialorder %v1339, 1.0
        %vm1344 = vcmp.ge.f32.partialorder %v1340, 1.0
        %vm1345 = vcmp.ge.f32.partialorder %v1341, 1.0
        %v1346 = vsel %vm1342, 1.0, 0.0
        %v1347 = vsel %vm1343, 1.0, 0.0
        %v1348 = vsel %vm1344, 1.0, 0.0
        %v1349 = vsel %vm1345, 1.0, 0.0
        %vm1350 = vcmask 523264
        %1351 = vst.msk [vmem:[%s267] sm:$0xff] %vm1350, %v1346
        %1352 = vst.msk [vmem:[%s267 + $0x8] sm:$0xff] %vm1350, %v1347
        %1353 = vst.msk [vmem:[%s267 + $0x10] sm:$0xff] %vm1350, %v1348
        %1354 = vst.msk [vmem:[%s267 + $0x18] sm:$0xff] %vm1350, %v1349
        %v1355 = vsel %vm1342, 0.0, %v1338
        %v1356 = vsel %vm1343, 0.0, %v1339
        %v1357 = vsel %vm1344, 0.0, %v1340
        %v1358 = vsel %vm1345, 0.0, %v1341
        %1359 = vmatprep.subr.bf16.mxu0 0
        %1360 = vmatpush1.bf16.msra.mxu0 %v849
        %1361 = vmatprep.subr.bf16.mxu0 0
        %1362 = vmatpush1.bf16.msra.mxu0 %v850
        %1363 = vmatprep.subr.bf16.mxu0 0
        %1364 = vmatpush1.bf16.msra.mxu0 %v851
        %1365 = vmatprep.subr.bf16.mxu0 0
        %1366 = vmatpush1.bf16.msra.mxu0 %v852
        %1367 = vmatprep.subr.bf16.mxu0 0
        %1368 = vmatpush1.bf16.msra.mxu0 %v853
        %1369 = vmatprep.subr.bf16.mxu0 0
        %1370 = vmatpush1.bf16.msra.mxu0 %v854
        %1371 = vmatprep.subr.bf16.mxu0 0
        %1372 = vmatpush1.bf16.msra.mxu0 %v855
        %1373 = vmatprep.subr.bf16.mxu0 0
        %1374 = vmatpush1.bf16.msra.mxu0 %v856
        %1375 = vmatprep.subr.bf16.mxu0 0
        %1376 = vmatpush1.bf16.msra.mxu0 0
        %1377 = vmatprep.subr.bf16.mxu0 0
        %1378 = vmatpush1.bf16.msra.mxu0 0
        %1379 = vmatprep.subr.bf16.mxu0 0
        %1380 = vmatpush1.bf16.msra.mxu0 0
        %1381 = vmatprep.subr.bf16.mxu0 0
        %1382 = vmatpush1.bf16.msra.mxu0 0
        %1383 = vmatprep.subr.bf16.mxu0 0
        %1384 = vmatpush1.bf16.msra.mxu0 0
        %1385 = vmatprep.subr.bf16.mxu0 0
        %1386 = vmatpush1.bf16.msra.mxu0 0
        %1387 = vmatprep.subr.bf16.mxu0 0
        %1388 = vmatpush1.bf16.msra.mxu0 0
        %1389 = vmatprep.subr.bf16.mxu0 0
        %1390 = vmatpush1.bf16.msra.mxu0 0
        %1391 = vmatprep.mubr.bf16.mxu0 0
        %1392 = vmatmul.mubr.bf16.gmra.mrb[0].mxu0 %v1281
        %v1393 = vpop.f32.mrb[0].mxu0
        %v1394 = vadd.f32 %v392, %v1393
        %v1395 = vpop.f32.mrb[0].mxu0
        %v1396 = vpop.f32.mrb[0].mxu0
        %v1397 = vadd.f32 %v397, %v1396
        %v1398 = vpop.f32.mrb[0].mxu0
        %1399 = vmatprep.mubr.bf16.mxu0 0
        %1400 = vmatmul.mubr.bf16.gmra.mrb[0].mxu0 %v1282
        %v1401 = vpop.f32.mrb[0].mxu0
        %v1402 = vadd.f32 %v402, %v1401
        %v1403 = vpop.f32.mrb[0].mxu0
        %v1404 = vpop.f32.mrb[0].mxu0
        %v1405 = vadd.f32 %v407, %v1404
        %v1406 = vpop.f32.mrb[0].mxu0
        %1407 = vdwg.mxu0
        %v1408 = vsub.f32 %v1394, %v1355
        %v1409 = vsub.f32 %v1397, %v1356
        %v1410 = vsub.f32 %v1402, %v1357
        %v1411 = vsub.f32 %v1405, %v1358
        %v1412 = vmul.f32 %v1408, 0.5
        %v1413 = vmul.f32 %v1409, 0.5
        %v1414 = vmul.f32 %v1410, 0.5
        %v1415 = vmul.f32 %v1411, 0.5
        %v1416 = vadd.f32 %v1355, %v1412
        %v1417 = vadd.f32 %v1356, %v1413
        %v1418 = vadd.f32 %v1357, %v1414
        %v1419 = vadd.f32 %v1358, %v1415
        %vm1420 = vcmp.ge.f32.partialorder %v1416, 1.0
        %vm1421 = vcmp.ge.f32.partialorder %v1417, 1.0
        %vm1422 = vcmp.ge.f32.partialorder %v1418, 1.0
        %vm1423 = vcmp.ge.f32.partialorder %v1419, 1.0
        %v1424 = vsel %vm1420, 1.0, 0.0
        %v1425 = vsel %vm1421, 1.0, 0.0
        %v1426 = vsel %vm1422, 1.0, 0.0
        %v1427 = vsel %vm1423, 1.0, 0.0
        %s1428 = scalar_lea.vmem %s267, 32 [#allocation5]
        %1429 = vst.msk [vmem:[%s1428] sm:$0xff] %vm1350, %v1424
        %1430 = vst.msk [vmem:[%s1428 + $0x8] sm:$0xff] %vm1350, %v1425
        %1431 = vst.msk [vmem:[%s1428 + $0x10] sm:$0xff] %vm1350, %v1426
        %1432 = vst.msk [vmem:[%s1428 + $0x18] sm:$0xff] %vm1350, %v1427
        %v1433 = vsel %vm1420, 0.0, %v1416
        %v1434 = vsel %vm1421, 0.0, %v1417
        %v1435 = vsel %vm1422, 0.0, %v1418
        %v1436 = vsel %vm1423, 0.0, %v1419
        %1437 = vmatprep.subr.bf16.mxu0 0
        %1438 = vmatpush1.bf16.msra.mxu0 %v1057
        %1439 = vmatprep.subr.bf16.mxu0 0
        %1440 = vmatpush1.bf16.msra.mxu0 %v1058
        %1441 = vmatprep.subr.bf16.mxu0 0
        %1442 = vmatpush1.bf16.msra.mxu0 %v1059
        %1443 = vmatprep.subr.bf16.mxu0 0
        %1444 = vmatpush1.bf16.msra.mxu0 %v1060
        %1445 = vmatprep.subr.bf16.mxu0 0
        %1446 = vmatpush1.bf16.msra.mxu0 %v1061
        %1447 = vmatprep.subr.bf16.mxu0 0
        %1448 = vmatpush1.bf16.msra.mxu0 %v1062
        %1449 = vmatprep.subr.bf16.mxu0 0
        %1450 = vmatpush1.bf16.msra.mxu0 %v1063
        %1451 = vmatprep.subr.bf16.mxu0 0
        %1452 = vmatpush1.bf16.msra.mxu0 %v1064
        %1453 = vmatprep.subr.bf16.mxu0 0
        %1454 = vmatpush1.bf16.msra.mxu0 0
        %1455 = vmatprep.subr.bf16.mxu0 0
        %1456 = vmatpush1.bf16.msra.mxu0 0
        %1457 = vmatprep.subr.bf16.mxu0 0
        %1458 = vmatpush1.bf16.msra.mxu0 0
        %1459 = vmatprep.subr.bf16.mxu0 0
        %1460 = vmatpush1.bf16.msra.mxu0 0
        %1461 = vmatprep.subr.bf16.mxu0 0
        %1462 = vmatpush1.bf16.msra.mxu0 0
        %1463 = vmatprep.subr.bf16.mxu0 0
        %1464 = vmatpush1.bf16.msra.mxu0 0
        %1465 = vmatprep.subr.bf16.mxu0 0
        %1466 = vmatpush1.bf16.msra.mxu0 0
        %1467 = vmatprep.subr.bf16.mxu0 0
        %1468 = vmatpush1.bf16.msra.mxu0 0
        %1469 = vmatprep.mubr.bf16.mxu0 0
        %1470 = vmatmul.mubr.bf16.gmra.mrb[0].mxu0 %v1281
        %v1471 = vpop.f32.mrb[0].mxu0
        %v1472 = vadd.f32 %v392, %v1471
        %v1473 = vpop.f32.mrb[0].mxu0
        %v1474 = vpop.f32.mrb[0].mxu0
        %v1475 = vadd.f32 %v397, %v1474
        %v1476 = vpop.f32.mrb[0].mxu0
        %1477 = vmatprep.mubr.bf16.mxu0 0
        %1478 = vmatmul.mubr.bf16.gmra.mrb[0].mxu0 %v1282
        %v1479 = vpop.f32.mrb[0].mxu0
        %v1480 = vadd.f32 %v402, %v1479
        %v1481 = vpop.f32.mrb[0].mxu0
        %v1482 = vpop.f32.mrb[0].mxu0
        %v1483 = vadd.f32 %v407, %v1482
        %v1484 = vpop.f32.mrb[0].mxu0
        %1485 = vdwg.mxu0
        %v1486 = vsub.f32 %v1472, %v1433
        %v1487 = vsub.f32 %v1475, %v1434
        %v1488 = vsub.f32 %v1480, %v1435
        %v1489 = vsub.f32 %v1483, %v1436
        %v1490 = vmul.f32 %v1486, 0.5
        %v1491 = vmul.f32 %v1487, 0.5
        %v1492 = vmul.f32 %v1488, 0.5
        %v1493 = vmul.f32 %v1489, 0.5
        %v1494 = vadd.f32 %v1433, %v1490
        %v1495 = vadd.f32 %v1434, %v1491
        %v1496 = vadd.f32 %v1435, %v1492
        %v1497 = vadd.f32 %v1436, %v1493
        %vm1498 = vcmp.ge.f32.partialorder %v1494, 1.0
        %vm1499 = vcmp.ge.f32.partialorder %v1495, 1.0
        %vm1500 = vcmp.ge.f32.partialorder %v1496, 1.0
        %vm1501 = vcmp.ge.f32.partialorder %v1497, 1.0
        %v1502 = vsel %vm1498, 1.0, 0.0
        %v1503 = vsel %vm1499, 1.0, 0.0
        %v1504 = vsel %vm1500, 1.0, 0.0
        %v1505 = vsel %vm1501, 1.0, 0.0
        %s1506 = scalar_lea.vmem %s267, 64 [#allocation5]
        %1507 = vst.msk [vmem:[%s1506] sm:$0xff] %vm1350, %v1502
        %1508 = vst.msk [vmem:[%s1506 + $0x8] sm:$0xff] %vm1350, %v1503
        %1509 = vst.msk [vmem:[%s1506 + $0x10] sm:$0xff] %vm1350, %v1504
        %1510 = vst.msk [vmem:[%s1506 + $0x18] sm:$0xff] %vm1350, %v1505
        %v1511 = vsel %vm1498, 0.0, %v1494
        %v1512 = vsel %vm1499, 0.0, %v1495
        %v1513 = vsel %vm1500, 0.0, %v1496
        %v1514 = vsel %vm1501, 0.0, %v1497
        %1515 = vmatprep.subr.bf16.mxu0 0
        %1516 = vmatpush1.bf16.msra.mxu0 %v1265
        %1517 = vmatprep.subr.bf16.mxu0 0
        %1518 = vmatpush1.bf16.msra.mxu0 %v1266
        %1519 = vmatprep.subr.bf16.mxu0 0
        %1520 = vmatpush1.bf16.msra.mxu0 %v1267
        %1521 = vmatprep.subr.bf16.mxu0 0
        %1522 = vmatpush1.bf16.msra.mxu0 %v1268
        %1523 = vmatprep.subr.bf16.mxu0 0
        %1524 = vmatpush1.bf16.msra.mxu0 %v1269
        %1525 = vmatprep.subr.bf16.mxu0 0
        %1526 = vmatpush1.bf16.msra.mxu0 %v1270
        %1527 = vmatprep.subr.bf16.mxu0 0
        %1528 = vmatpush1.bf16.msra.mxu0 %v1271
        %1529 = vmatprep.subr.bf16.mxu0 0
        %1530 = vmatpush1.bf16.msra.mxu0 %v1272
        %1531 = vmatprep.subr.bf16.mxu0 0
        %1532 = vmatpush1.bf16.msra.mxu0 0
        %1533 = vmatprep.subr.bf16.mxu0 0
        %1534 = vmatpush1.bf16.msra.mxu0 0
        %1535 = vmatprep.subr.bf16.mxu0 0
        %1536 = vmatpush1.bf16.msra.mxu0 0
        %1537 = vmatprep.subr.bf16.mxu0 0
        %1538 = vmatpush1.bf16.msra.mxu0 0
        %1539 = vmatprep.subr.bf16.mxu0 0
        %1540 = vmatpush1.bf16.msra.mxu0 0
        %1541 = vmatprep.subr.bf16.mxu0 0
        %1542 = vmatpush1.bf16.msra.mxu0 0
        %1543 = vmatprep.subr.bf16.mxu0 0
        %1544 = vmatpush1.bf16.msra.mxu0 0
        %1545 = vmatprep.subr.bf16.mxu0 0
        %1546 = vmatpush1.bf16.msra.mxu0 0
        %1547 = vmatprep.mubr.bf16.mxu0 0
        %1548 = vmatmul.mubr.bf16.gmra.mrb[0].mxu0 %v1281
        %v1549 = vpop.f32.mrb[0].mxu0
        %v1550 = vadd.f32 %v392, %v1549
        %v1551 = vpop.f32.mrb[0].mxu0
        %v1552 = vpop.f32.mrb[0].mxu0
        %v1553 = vadd.f32 %v397, %v1552
        %v1554 = vpop.f32.mrb[0].mxu0
        %1555 = vmatprep.mubr.bf16.mxu0 0
        %1556 = vmatmul.mubr.bf16.gmra.mrb[0].mxu0 %v1282
        %v1557 = vpop.f32.mrb[0].mxu0
        %v1558 = vadd.f32 %v402, %v1557
        %v1559 = vpop.f32.mrb[0].mxu0
        %v1560 = vpop.f32.mrb[0].mxu0
        %v1561 = vadd.f32 %v407, %v1560
        %v1562 = vpop.f32.mrb[0].mxu0
        %1563 = vdwg.mxu0
        %v1564 = vsub.f32 %v1550, %v1511
        %v1565 = vsub.f32 %v1553, %v1512
        %v1566 = vsub.f32 %v1558, %v1513
        %v1567 = vsub.f32 %v1561, %v1514
        %v1568 = vmul.f32 %v1564, 0.5
        %v1569 = vmul.f32 %v1565, 0.5
        %v1570 = vmul.f32 %v1566, 0.5
        %v1571 = vmul.f32 %v1567, 0.5
        %v1572 = vadd.f32 %v1511, %v1568
        %v1573 = vadd.f32 %v1512, %v1569
        %v1574 = vadd.f32 %v1513, %v1570
        %v1575 = vadd.f32 %v1514, %v1571
        %vm1576 = vcmp.ge.f32.partialorder %v1572, 1.0
        %vm1577 = vcmp.ge.f32.partialorder %v1573, 1.0
        %vm1578 = vcmp.ge.f32.partialorder %v1574, 1.0
        %vm1579 = vcmp.ge.f32.partialorder %v1575, 1.0
        %v1580 = vsel %vm1576, 1.0, 0.0
        %v1581 = vsel %vm1577, 1.0, 0.0
        %v1582 = vsel %vm1578, 1.0, 0.0
        %v1583 = vsel %vm1579, 1.0, 0.0
        %s1584 = scalar_lea.vmem %s267, 96 [#allocation5]
        %1585 = vst.msk [vmem:[%s1584] sm:$0xff] %vm1350, %v1580
        %1586 = vst.msk [vmem:[%s1584 + $0x8] sm:$0xff] %vm1350, %v1581
        %1587 = vst.msk [vmem:[%s1584 + $0x10] sm:$0xff] %vm1350, %v1582
        %1588 = vst.msk [vmem:[%s1584 + $0x18] sm:$0xff] %vm1350, %v1583
        %s1589 = sand.u32 %s140, 1
        %s1590 = scalar_lea.sflag [#allocation4], %s1589
        %s1591 = sand.u32 %s140, 1
        %s1592 = smul.addr %s1591, 128
        %s1593 = scalar_lea.vmem [#allocation5], %s1592
        // Predicated region
        $region45: #{tpu_custom_call.1} parent=39 // pred_check
          %p1594 = pneg %p150
        $region46: #{tpu_custom_call.1} parent=39 // pred_check_branch
          %1596 = sbr.rel (%p1594) target = $region48
        $region47: #{tpu_custom_call.1} parent=39 // pred_region
          #allocation9 [shape = 'u32[6]{0}', space=smem, size = 0x18, scoped, tag = 'DMA stride descriptor']
          %s1598 = ssub.s32 2048, 2048
          %1599 = vsyncadd %s1590, %s1598
          %s1600 = smul.addr %s22, 4
          %s1601 = smul.addr %s1600, 128
          %s1602 = scalar_lea.hbm %s5, %s1601
          %s1604 = sshll.u32 1, 14
          %s1605 = sxor.u32 4294967295, %s1604
          %s1608 = sshll.u32 7, 18
          %s1609 = sxor.u32 4294967295, %s1608
          %s1610 = sand.u32 0, %s1609
          %s1612 = sor.u32 %s1610, 0
          %s1614 = sshll.u32 3, 24
          %s1615 = sxor.u32 4294967295, %s1614
          %s1616 = sand.u32 %s1612, %s1615
          %s1618 = sor.u32 %s1616, 0
          %s1619 = sshll.u32 %s1593, 4
          %s1620 = int_to_ptr.vmem [resolvable:$true] %s1619
          %1626 = sst [smem:[#allocation9]] 512
          %s1627 = scalar_lea.smem [#allocation9], 1
          %1628 = sst [smem:[%s1627]] 1024
          %s1629 = scalar_lea.smem [#allocation9], 2
          %1630 = sst [smem:[%s1629]] 4
          %s1631 = scalar_lea.smem [#allocation9], 3
          %1632 = sst [smem:[%s1631]] 128
          %s1633 = scalar_lea.smem [#allocation9], 4
          %1634 = sst [smem:[%s1633]] 128
          %s1635 = scalar_lea.smem [#allocation9], 5
          %1636 = sst [smem:[%s1635]] 8
          %1638 = dma.general %s1620, 2048, %s1602, %s1590, [#allocation8], [#allocation9], %s1618, 0
        $region48: #{tpu_custom_call.1} parent=39 // pred_fallthru
          _
      $region40: #{tpu_custom_call.1} parent=5 // pred_fallthru
        _
      %p1639 = scmp.le.s32.totalorder 2, %s17
      // Predicated region
      $region49: #{tpu_custom_call.1} parent=5 // pred_check
        %p1640 = pneg %p1639
      $region50: #{tpu_custom_call.1} parent=5 // pred_check_branch
        %1642 = sbr.rel (%p1640) target = $region52
      $region51: #{tpu_custom_call.1} parent=5 // pred_region
        %s1643 = ssub.s32 %s17, 2
        // Predicated region
        $region53: #{tpu_custom_call.1} parent=51 // pred_check
          %p1644 = pneg %p156
        $region54: #{tpu_custom_call.1} parent=51 // pred_check_branch
          %1646 = sbr.rel (%p1644) target = $region56
        $region55: #{tpu_custom_call.1} parent=51 // pred_region
          %s1647 = sand.u32 %s141, 1
          %s1648 = scalar_lea.sflag [#allocation4], %s1647
          %s1649 = sand.u32 %s141, 1
          %s1650 = smul.addr %s1649, 128
          %s1651 = scalar_lea.vmem [#allocation5], %s1650
          %1652 = dma.done %s1648, 2048
        $region56: #{tpu_custom_call.1} parent=51 // pred_fallthru
          _
      $region52: #{tpu_custom_call.1} parent=5 // pred_fallthru
        _
    $region6: #{tpu_custom_call.1} parent=1 // loop_footer
      %s21 = sadd.s32 1, %s17
    $region7: #{tpu_custom_call.1} parent=1 // loop_footer_branch
      %16 = sbr.rel target = $region3
    $region8: #{tpu_custom_call.1} parent=1 // loop_exit
      _
    %1653 = vsyncpa [#allocation3], 1
    %s1654 = scalar_lea.sflag [#allocation3], 1
    %1655 = vsyncpa %s1654, 1
    %1656 = vsyncpa [#allocation4], 1
    %s1657 = scalar_lea.sflag [#allocation4], 1
    %1658 = vsyncpa %s1657, 1

</llo_original>
